<compile_context>
chip_gen: v6e
topology: v6e:2x2x1
jax: 0.10.0
libtpu: 0.0.40
codegen_flags: <defaults>
</compile_context>

<pallas_src>
import math

import jax
import jax.numpy as jnp
import numpy as np
from jax import lax
from jax.experimental import pallas as pl
from jax.experimental.pallas import tpu as pltpu

_BN_EPS = 1e-5
_LANE = 128


def _round_up(v, m):
    return (v + m - 1) // m * m


def _lane_pad(width, chans):
    """Smallest padded width such that width*chans is a multiple of 128."""
    return _round_up(width, _LANE // math.gcd(_LANE, chans))


def _banded_conv_weight(w_hwio, in_wp, out_w, out_wp):
    """Fold the KW width taps of a VALID conv into a block-banded matmul weight.

    w_hwio: (KH, KW, CI, CO).  Returns (KH*in_wp*CI, out_wp*CO) with rows laid
    out [kh, iw, ci] and columns [ow, co] so that each kh-row-shifted input
    slab times this matrix accumulates the full conv.  Padded ow columns
    (>= out_w) get zero weights.
    """
    KH, KW, CI, CO = w_hwio.shape
    iw = jnp.arange(in_wp)[None, :, None]
    ow = jnp.arange(out_wp)[None, None, :]
    kw = jnp.arange(KW)[:, None, None]
    sel = jnp.logical_and(iw == ow + kw, ow < out_w).astype(w_hwio.dtype)
    # (KW, in_wp, out_wp) x (KH, KW, CI, CO) -> (KH, in_wp, CI, out_wp, CO)
    t = jnp.einsum("xio,hxac->hiaoc", sel, w_hwio,
                   precision=lax.Precision.HIGHEST)
    return t.reshape(KH * in_wp * CI, out_wp * CO)


def plain_cnn_forward(x_nchw, params):
    """PlainCNN forward.  x_nchw: (N, Cin, H, W) f32 -> (N, Cout, OH2, OW2)."""
    w1, w2 = params["w1"], params["w2"]          # HWIO
    KH, KW, Cin, C = w1.shape
    N, _, H, W = x_nchw.shape
    OH1, OW1 = H - KH + 1, W - KW + 1
    OH2, OW2 = OH1 - KH + 1, OW1 - KW + 1

    # Channel / width padding so every activation's last dim is 128-lane dense.
    CinP, CP = _round_up(Cin, 8), _round_up(C, 8)
    WP = _lane_pad(W, CinP)
    OW1P = _lane_pad(OW1, CP)
    OW2P = _lane_pad(OW2, CP)
    R = N * H                                    # row = (n, h)
    L1, LA, LO = WP * CinP, OW1P * CP, OW2P * CP

    # Guard the review's fragile invariants: every block-2 tap used by a VALID
    # output row/column reads a VALID block-1 activation row/column.
    assert OH2 + KH - 1 <= OH1 <= H and OW2 + KW - 1 <= OW1 <= OW1P

    # ---- wrapper-side prep: weights/params only, the input is NOT expanded --
    x = jnp.transpose(x_nchw, (0, 2, 3, 1))      # NCHW -> NHWC (PyTorch parity)
    x = jnp.pad(x, ((0, 0), (0, 0), (0, WP - W), (0, CinP - Cin)))
    x2d = x.reshape(R, L1)                       # lane = iw*CinP + ci

    w1p = jnp.pad(w1, ((0, 0), (0, 0), (0, CinP - Cin), (0, CP - C)))
    w2p = jnp.pad(w2, ((0, 0), (0, 0), (0, CP - C), (0, CP - C)))
    w1b = _banded_conv_weight(w1p, WP, OW1, OW1P)      # (KH*L1, LA)
    w2b = _banded_conv_weight(w2p, OW1P, OW2, OW2P)    # (KH*LA, LO)

    def tiled(v, owp):          # per-channel vector -> (1, owp*CP) lane vector
        return jnp.tile(jnp.pad(v, (0, CP - C)), owp).reshape(1, owp * CP)

    g1t, b1t = tiled(params["g1"], OW1P), tiled(params["bt1"], OW1P)
    g2t, b2t = tiled(params["g2"], OW2P), tiled(params["bt2"], OW2P)
    # nn.Conv2d biases are intentionally NOT passed: training-mode BatchNorm
    # subtracts the batch mean so any per-channel bias cancels exactly.

    def kernel(x_ref, w1_ref, w2_ref, g1_ref, b1_ref, g2_ref, b2_ref, o_ref):
        def shifted_taps(a):
            # (R, L) -> (R, KH*L): tap kh holds rows shifted up by kh.  Done
            # with a tiny (R, R) permutation matmul on the MXU (hides under
            # MXU slack) -- no unaligned sublane slices, no relayout copies.
            # Rows >= R-kh become zero; they only feed invalid output rows.
            ri = lax.broadcasted_iota(jnp.int32, (R, R), 0)
            ci = lax.broadcasted_iota(jnp.int32, (R, R), 1)
            taps = [a]
            for kh in range(1, KH):
                shift = (ci == ri + kh).astype(jnp.float32)
                taps.append(jnp.dot(shift, a,
                                    preferred_element_type=jnp.float32))
            return jnp.concatenate(taps, axis=1)

        def bn_relu(conv, oh, ow, gamma, beta):
            # Training-mode BatchNorm2d + ReLU, single masked pass, lane-dense.
            rows, lanes = conv.shape
            # In-kernel validity masks (no mask DMA): valid output rows / lanes.
            row_ok = (lax.broadcasted_iota(jnp.int32, (rows, 1), 0) % H) < oh
            lane_ok = lax.broadcasted_iota(jnp.int32, (1, lanes), 1) < ow * CP
            mask = jnp.logical_and(row_ok, lane_ok).astype(jnp.float32)
            # pool[l, m] = 1 where lanes l, m hold the same channel: one small
            # MXU dot sums each channel over its ow lane groups and broadcasts
            # the result back to every lane of that channel.
            li = lax.broadcasted_iota(jnp.int32, (lanes, lanes), 0)
            mi = lax.broadcasted_iota(jnp.int32, (lanes, lanes), 1)
            pool = ((li % CP) == (mi % CP)).astype(jnp.float32)
            masked = conv * mask
            s = jnp.sum(jnp.dot(masked, pool,
                                preferred_element_type=jnp.float32),
                        axis=0, keepdims=True)
            ss = jnp.sum(jnp.dot(masked * conv, pool,
                                 preferred_element_type=jnp.float32),
                         axis=0, keepdims=True)
            inv_n = 1.0 / float(N * oh * ow)
            mean = s * inv_n
            var = jnp.maximum(ss * inv_n - mean * mean, 0.0)   # biased var
            scale = gamma * lax.rsqrt(var + _BN_EPS)
            shift = beta - mean * scale
            return jnp.maximum(conv * scale + shift, 0.0)

        # ----- block 1: ONE (R, KH*L1) @ (KH*L1, LA) banded conv matmul -----
        conv1 = jnp.dot(shifted_taps(x_ref[...]), w1_ref[...],
                        preferred_element_type=jnp.float32)
        a1 = bn_relu(conv1, OH1, OW1, g1_ref[...], b1_ref[...])

        # ----- block 2, fused: activations never leave VMEM/vregs -----------
        conv2 = jnp.dot(shifted_taps(a1), w2_ref[...],
                        preferred_element_type=jnp.float32)
        o_ref[...] = bn_relu(conv2, OH2, OW2, g2_ref[...], b2_ref[...])

    out2d = pl.pallas_call(
        kernel,
        out_shape=jax.ShapeDtypeStruct((R, LO), jnp.float32),
        in_specs=[pl.BlockSpec(memory_space=pltpu.MemorySpace.VMEM)] * 7,
        out_specs=pl.BlockSpec(memory_space=pltpu.MemorySpace.VMEM),
        compiler_params=pltpu.CompilerParams(
            vmem_limit_bytes=32 * 1024 * 1024),
    )(x2d, w1b, w2b, g1t, b1t, g2t, b2t)

    # Drop row/width/channel padding; return NCHW to match the PyTorch module.
    out = out2d.reshape(N, H, OW2P, CP)[:, :OH2, :OW2, :C]
    return jnp.transpose(out, (0, 3, 1, 2))


def plain_cnn_reference(x_nchw, params):
    """Pure-JAX/XLA reference: Conv2d -> training-mode BN -> ReLU, twice."""
    def block(x, w, b, g, bt):
        y = lax.conv_general_dilated(
            x, w, (1, 1), "VALID",
            dimension_numbers=("NHWC", "HWIO", "NHWC"),
            precision=lax.Precision.HIGHEST) + b
        mean = jnp.mean(y, axis=(0, 1, 2), keepdims=True)
        var = jnp.mean(jnp.square(y - mean), axis=(0, 1, 2), keepdims=True)
        return jnp.maximum((y - mean) * g * lax.rsqrt(var + _BN_EPS) + bt, 0.0)

    x = jnp.transpose(x_nchw, (0, 2, 3, 1))
    y = block(x, params["w1"], params["b1"], params["g1"], params["bt1"])
    y = block(y, params["w2"], params["b2"], params["g2"], params["bt2"])
    return jnp.transpose(y, (0, 3, 1, 2))


def init_params(key, in_channels, out_channels, kernel_size):
    # Deterministic synthetic init (shapes follow nn.Conv2d / nn.BatchNorm2d).
    ks = jax.random.split(key, 8)

    def conv_w(k, cin, cout):
        fan_in = cin * kernel_size * kernel_size
        bound = 1.0 / (fan_in ** 0.5)
        return jax.random.uniform(k, (kernel_size, kernel_size, cin, cout),
                                  jnp.float32, -bound, bound)   # HWIO

    def vec(k, c, scale=0.1, loc=0.0):
        return loc + scale * jax.random.normal(k, (c,), jnp.float32)

    return {
        "w1": conv_w(ks[0], in_channels, out_channels),
        # Conv biases kept only for nn.Conv2d parameter parity; they cancel
        # under training-mode BatchNorm and are not used in the kernel.
        "b1": vec(ks[1], out_channels),
        "g1": vec(ks[2], out_channels, loc=1.0),
        "bt1": vec(ks[3], out_channels),
        "w2": conv_w(ks[4], out_channels, out_channels),
        "b2": vec(ks[5], out_channels),
        "g2": vec(ks[6], out_channels, loc=1.0),
        "bt2": vec(ks[7], out_channels),
    }


if __name__ == "__main__":
    key = jax.random.PRNGKey(0)
    kx, kp = jax.random.split(key)
    N, Cin, H, W = 2, 4, 16, 16
    Cout, K = 8, 3
    x = jax.random.normal(kx, (N, Cin, H, W), jnp.float32)   # PyTorch NCHW input
    params = init_params(kp, Cin, Cout, K)

    y = jax.jit(plain_cnn_forward)(x, params)
    jax.block_until_ready(y)
    assert y.shape == (N, Cout, H - 2 * (K - 1), W - 2 * (K - 1)), y.shape

    # Correctness guard against a pure-XLA reference (tolerance is loose only
    # to absorb MXU f32 pass rounding; structural bugs would be O(1) errors).
    y_ref = plain_cnn_reference(x, params)
    np.testing.assert_allclose(np.asarray(y), np.asarray(y_ref),
                               rtol=2e-2, atol=2e-2)
    # TODO(synk): BatchNorm running_mean/running_var updates (training-mode
    # side effect) are not modeled; they do not affect the forward output.
    print("KERNEL_OK")
</pallas_src>

<mosaic_0001>
module attributes {stable_mosaic.version = 11 : i64} {
  func.func @kernel(%arg0: memref<32x128xf32, #tpu.memory_space<vmem>>, %arg1: memref<384x128xf32, #tpu.memory_space<vmem>>, %arg2: memref<384x128xf32, #tpu.memory_space<vmem>>, %arg3: memref<1x128xf32, #tpu.memory_space<vmem>>, %arg4: memref<1x128xf32, #tpu.memory_space<vmem>>, %arg5: memref<1x128xf32, #tpu.memory_space<vmem>>, %arg6: memref<1x128xf32, #tpu.memory_space<vmem>>, %arg7: memref<32x128xf32, #tpu.memory_space<vmem>>) attributes {dimension_semantics = [], scalar_prefetch = 0 : i64, scratch_operands = 0 : i64, tpu.core_type = #tpu.core_type<tc>} {
    %c0 = arith.constant 0 : index
    %c0_0 = arith.constant 0 : index
    %0 = vector.load %arg0[%c0, %c0_0] : memref<32x128xf32, #tpu.memory_space<vmem>>, vector<32x128xf32>
    %1 = tpu.iota {dimensions = array<i32: 0>} : vector<32x32xi32>
    %2 = tpu.iota {dimensions = array<i32: 1>} : vector<32x32xi32>
    %c1_i32 = arith.constant 1 : i32
    %3 = vector.broadcast %c1_i32 : i32 to vector<32x32xi32>
    %4 = arith.addi %1, %3 : vector<32x32xi32>
    %5 = arith.cmpi eq, %2, %4 : vector<32x32xi32>
    %6 = arith.extui %5 : vector<32x32xi1> to vector<32x32xi32>
    %7 = arith.sitofp %6 : vector<32x32xi32> to vector<32x32xf32>
    %cst = arith.constant dense<0.000000e+00> : vector<32x128xf32>
    %8 = tpu.matmul %7, %0, %cst {dimension_numbers = #tpu.dot_dimension_numbers<[1], [0], [0], [1], [0, 0, 1, 1], [], []>} : vector<32x32xf32>, vector<32x128xf32>, vector<32x128xf32> -> vector<32x128xf32>
    %c2_i32 = arith.constant 2 : i32
    %9 = vector.broadcast %c2_i32 : i32 to vector<32x32xi32>
    %10 = arith.addi %1, %9 : vector<32x32xi32>
    %11 = arith.cmpi eq, %2, %10 : vector<32x32xi32>
    %12 = arith.extui %11 : vector<32x32xi1> to vector<32x32xi32>
    %13 = arith.sitofp %12 : vector<32x32xi32> to vector<32x32xf32>
    %cst_1 = arith.constant dense<0.000000e+00> : vector<32x128xf32>
    %14 = tpu.matmul %13, %0, %cst_1 {dimension_numbers = #tpu.dot_dimension_numbers<[1], [0], [0], [1], [0, 0, 1, 1], [], []>} : vector<32x32xf32>, vector<32x128xf32>, vector<32x128xf32> -> vector<32x128xf32>
    %15 = tpu.concatenate %0, %8, %14 in 1 : vector<32x128xf32>, vector<32x128xf32>, vector<32x128xf32> -> vector<32x384xf32>
    %c0_2 = arith.constant 0 : index
    %c0_3 = arith.constant 0 : index
    %16 = vector.load %arg1[%c0_2, %c0_3] : memref<384x128xf32, #tpu.memory_space<vmem>>, vector<384x128xf32>
    %cst_4 = arith.constant dense<0.000000e+00> : vector<32x128xf32>
    %17 = tpu.matmul %15, %16, %cst_4 {dimension_numbers = #tpu.dot_dimension_numbers<[1], [0], [0], [1], [0, 0, 1, 1], [], []>} : vector<32x384xf32>, vector<384x128xf32>, vector<32x128xf32> -> vector<32x128xf32>
    %c0_5 = arith.constant 0 : index
    %c0_6 = arith.constant 0 : index
    %18 = vector.load %arg3[%c0_5, %c0_6] : memref<1x128xf32, #tpu.memory_space<vmem>>, vector<1x128xf32>
    %c0_7 = arith.constant 0 : index
    %c0_8 = arith.constant 0 : index
    %19 = vector.load %arg4[%c0_7, %c0_8] : memref<1x128xf32, #tpu.memory_space<vmem>>, vector<1x128xf32>
    %20 = tpu.iota {dimensions = array<i32: 0>} : vector<32x1xi32>
    %c16_i32 = arith.constant 16 : i32
    %c0_i32 = arith.constant 0 : i32
    %21 = arith.cmpi eq, %c16_i32, %c0_i32 : i32
    %c1_i32_9 = arith.constant 1 : i32
    %22 = arith.select %21, %c1_i32_9, %c16_i32 : i32
    %23 = vector.broadcast %22 : i32 to vector<32x1xi32>
    %24 = arith.remsi %20, %23 : vector<32x1xi32>
    %c0_i32_10 = arith.constant 0 : i32
    %25 = vector.broadcast %c0_i32_10 : i32 to vector<32x1xi32>
    %26 = arith.cmpi ne, %24, %25 : vector<32x1xi32>
    %c0_i32_11 = arith.constant 0 : i32
    %27 = vector.broadcast %c0_i32_11 : i32 to vector<32x1xi32>
    %28 = arith.cmpi slt, %24, %27 : vector<32x1xi32>
    %c0_i32_12 = arith.constant 0 : i32
    %29 = arith.cmpi slt, %22, %c0_i32_12 : i32
    %30 = vector.broadcast %29 : i1 to vector<32x1xi1>
    %31 = vector.broadcast %30 : vector<32x1xi1> to vector<32x1xi1>
    %32 = arith.xori %28, %31 : vector<32x1xi1>
    %33 = arith.andi %32, %26 : vector<32x1xi1>
    %34 = vector.broadcast %22 : i32 to vector<32x1xi32>
    %35 = arith.addi %24, %34 : vector<32x1xi32>
    %36 = arith.select %33, %35, %24 : vector<32x1xi1>, vector<32x1xi32>
    %c14_i32 = arith.constant 14 : i32
    %37 = vector.broadcast %c14_i32 : i32 to vector<32x1xi32>
    %38 = arith.cmpi slt, %36, %37 : vector<32x1xi32>
    %39 = tpu.iota {dimensions = array<i32: 1>} : vector<1x128xi32>
    %c112_i32 = arith.constant 112 : i32
    %40 = vector.broadcast %c112_i32 : i32 to vector<1x128xi32>
    %41 = arith.cmpi slt, %39, %40 : vector<1x128xi32>
    %42 = vector.broadcast %38 : vector<32x1xi1> to vector<32x128xi1>
    %43 = vector.broadcast %41 : vector<1x128xi1> to vector<32x128xi1>
    %44 = arith.andi %42, %43 : vector<32x128xi1>
    %45 = arith.extui %44 : vector<32x128xi1> to vector<32x128xi32>
    %46 = arith.sitofp %45 : vector<32x128xi32> to vector<32x128xf32>
    %47 = tpu.iota {dimensions = array<i32: 0>} : vector<128x128xi32>
    %48 = tpu.iota {dimensions = array<i32: 1>} : vector<128x128xi32>
    %c8_i32 = arith.constant 8 : i32
    %c0_i32_13 = arith.constant 0 : i32
    %49 = arith.cmpi eq, %c8_i32, %c0_i32_13 : i32
    %c1_i32_14 = arith.constant 1 : i32
    %50 = arith.select %49, %c1_i32_14, %c8_i32 : i32
    %51 = vector.broadcast %50 : i32 to vector<128x128xi32>
    %52 = arith.remsi %47, %51 : vector<128x128xi32>
    %c0_i32_15 = arith.constant 0 : i32
    %53 = vector.broadcast %c0_i32_15 : i32 to vector<128x128xi32>
    %54 = arith.cmpi ne, %52, %53 : vector<128x128xi32>
    %c0_i32_16 = arith.constant 0 : i32
    %55 = vector.broadcast %c0_i32_16 : i32 to vector<128x128xi32>
    %56 = arith.cmpi slt, %52, %55 : vector<128x128xi32>
    %c0_i32_17 = arith.constant 0 : i32
    %57 = arith.cmpi slt, %50, %c0_i32_17 : i32
    %58 = vector.broadcast %57 : i1 to vector<128x128xi1>
    %59 = vector.broadcast %58 : vector<128x128xi1> to vector<128x128xi1>
    %60 = arith.xori %56, %59 : vector<128x128xi1>
    %61 = arith.andi %60, %54 : vector<128x128xi1>
    %62 = vector.broadcast %50 : i32 to vector<128x128xi32>
    %63 = arith.addi %52, %62 : vector<128x128xi32>
    %64 = arith.select %61, %63, %52 : vector<128x128xi1>, vector<128x128xi32>
    %c8_i32_18 = arith.constant 8 : i32
    %c0_i32_19 = arith.constant 0 : i32
    %65 = arith.cmpi eq, %c8_i32_18, %c0_i32_19 : i32
    %c1_i32_20 = arith.constant 1 : i32
    %66 = arith.select %65, %c1_i32_20, %c8_i32_18 : i32
    %67 = vector.broadcast %66 : i32 to vector<128x128xi32>
    %68 = arith.remsi %48, %67 : vector<128x128xi32>
    %c0_i32_21 = arith.constant 0 : i32
    %69 = vector.broadcast %c0_i32_21 : i32 to vector<128x128xi32>
    %70 = arith.cmpi ne, %68, %69 : vector<128x128xi32>
    %c0_i32_22 = arith.constant 0 : i32
    %71 = vector.broadcast %c0_i32_22 : i32 to vector<128x128xi32>
    %72 = arith.cmpi slt, %68, %71 : vector<128x128xi32>
    %c0_i32_23 = arith.constant 0 : i32
    %73 = arith.cmpi slt, %66, %c0_i32_23 : i32
    %74 = vector.broadcast %73 : i1 to vector<128x128xi1>
    %75 = vector.broadcast %74 : vector<128x128xi1> to vector<128x128xi1>
    %76 = arith.xori %72, %75 : vector<128x128xi1>
    %77 = arith.andi %76, %70 : vector<128x128xi1>
    %78 = vector.broadcast %66 : i32 to vector<128x128xi32>
    %79 = arith.addi %68, %78 : vector<128x128xi32>
    %80 = arith.select %77, %79, %68 : vector<128x128xi1>, vector<128x128xi32>
    %81 = arith.cmpi eq, %64, %80 : vector<128x128xi32>
    %82 = arith.extui %81 : vector<128x128xi1> to vector<128x128xi32>
    %83 = arith.sitofp %82 : vector<128x128xi32> to vector<128x128xf32>
    %84 = arith.mulf %17, %46 : vector<32x128xf32>
    %cst_24 = arith.constant dense<0.000000e+00> : vector<32x128xf32>
    %85 = tpu.matmul %84, %83, %cst_24 {dimension_numbers = #tpu.dot_dimension_numbers<[1], [0], [0], [1], [0, 0, 1, 1], [], []>} : vector<32x128xf32>, vector<128x128xf32>, vector<32x128xf32> -> vector<32x128xf32>
    %cst_25 = arith.constant dense<0.000000e+00> : vector<128xf32>
    %86 = vector.multi_reduction <add>, %85, %cst_25 [0] : vector<32x128xf32> to vector<128xf32>
    %87 = vector.shape_cast %86 : vector<128xf32> to vector<1x128xf32>
    %88 = arith.mulf %84, %17 : vector<32x128xf32>
    %cst_26 = arith.constant dense<0.000000e+00> : vector<32x128xf32>
    %89 = tpu.matmul %88, %83, %cst_26 {dimension_numbers = #tpu.dot_dimension_numbers<[1], [0], [0], [1], [0, 0, 1, 1], [], []>} : vector<32x128xf32>, vector<128x128xf32>, vector<32x128xf32> -> vector<32x128xf32>
    %cst_27 = arith.constant dense<0.000000e+00> : vector<128xf32>
    %90 = vector.multi_reduction <add>, %89, %cst_27 [0] : vector<32x128xf32> to vector<128xf32>
    %91 = vector.shape_cast %90 : vector<128xf32> to vector<1x128xf32>
    %cst_28 = arith.constant 0.00255102036 : f32
    %92 = vector.broadcast %cst_28 : f32 to vector<1x128xf32>
    %93 = arith.mulf %87, %92 : vector<1x128xf32>
    %cst_29 = arith.constant 0.00255102036 : f32
    %94 = vector.broadcast %cst_29 : f32 to vector<1x128xf32>
    %95 = arith.mulf %91, %94 : vector<1x128xf32>
    %96 = arith.mulf %93, %93 : vector<1x128xf32>
    %97 = arith.subf %95, %96 : vector<1x128xf32>
    %cst_30 = arith.constant 0.000000e+00 : f32
    %98 = vector.broadcast %cst_30 : f32 to vector<1x128xf32>
    %99 = arith.maximumf %97, %98 : vector<1x128xf32>
    %cst_31 = arith.constant 9.99999974E-6 : f32
    %100 = vector.broadcast %cst_31 : f32 to vector<1x128xf32>
    %101 = arith.addf %99, %100 : vector<1x128xf32>
    %102 = math.rsqrt %101 : vector<1x128xf32>
    %103 = arith.mulf %18, %102 : vector<1x128xf32>
    %104 = arith.mulf %93, %103 : vector<1x128xf32>
    %105 = arith.subf %19, %104 : vector<1x128xf32>
    %106 = vector.broadcast %103 : vector<1x128xf32> to vector<32x128xf32>
    %107 = arith.mulf %17, %106 : vector<32x128xf32>
    %108 = vector.broadcast %105 : vector<1x128xf32> to vector<32x128xf32>
    %109 = arith.addf %107, %108 : vector<32x128xf32>
    %cst_32 = arith.constant 0.000000e+00 : f32
    %110 = vector.broadcast %cst_32 : f32 to vector<32x128xf32>
    %111 = arith.maximumf %109, %110 : vector<32x128xf32>
    %112 = tpu.iota {dimensions = array<i32: 0>} : vector<32x32xi32>
    %113 = tpu.iota {dimensions = array<i32: 1>} : vector<32x32xi32>
    %c1_i32_33 = arith.constant 1 : i32
    %114 = vector.broadcast %c1_i32_33 : i32 to vector<32x32xi32>
    %115 = arith.addi %112, %114 : vector<32x32xi32>
    %116 = arith.cmpi eq, %113, %115 : vector<32x32xi32>
    %117 = arith.extui %116 : vector<32x32xi1> to vector<32x32xi32>
    %118 = arith.sitofp %117 : vector<32x32xi32> to vector<32x32xf32>
    %cst_34 = arith.constant dense<0.000000e+00> : vector<32x128xf32>
    %119 = tpu.matmul %118, %111, %cst_34 {dimension_numbers = #tpu.dot_dimension_numbers<[1], [0], [0], [1], [0, 0, 1, 1], [], []>} : vector<32x32xf32>, vector<32x128xf32>, vector<32x128xf32> -> vector<32x128xf32>
    %c2_i32_35 = arith.constant 2 : i32
    %120 = vector.broadcast %c2_i32_35 : i32 to vector<32x32xi32>
    %121 = arith.addi %112, %120 : vector<32x32xi32>
    %122 = arith.cmpi eq, %113, %121 : vector<32x32xi32>
    %123 = arith.extui %122 : vector<32x32xi1> to vector<32x32xi32>
    %124 = arith.sitofp %123 : vector<32x32xi32> to vector<32x32xf32>
    %cst_36 = arith.constant dense<0.000000e+00> : vector<32x128xf32>
    %125 = tpu.matmul %124, %111, %cst_36 {dimension_numbers = #tpu.dot_dimension_numbers<[1], [0], [0], [1], [0, 0, 1, 1], [], []>} : vector<32x32xf32>, vector<32x128xf32>, vector<32x128xf32> -> vector<32x128xf32>
    %126 = tpu.concatenate %111, %119, %125 in 1 : vector<32x128xf32>, vector<32x128xf32>, vector<32x128xf32> -> vector<32x384xf32>
    %c0_37 = arith.constant 0 : index
    %c0_38 = arith.constant 0 : index
    %127 = vector.load %arg2[%c0_37, %c0_38] : memref<384x128xf32, #tpu.memory_space<vmem>>, vector<384x128xf32>
    %cst_39 = arith.constant dense<0.000000e+00> : vector<32x128xf32>
    %128 = tpu.matmul %126, %127, %cst_39 {dimension_numbers = #tpu.dot_dimension_numbers<[1], [0], [0], [1], [0, 0, 1, 1], [], []>} : vector<32x384xf32>, vector<384x128xf32>, vector<32x128xf32> -> vector<32x128xf32>
    %c0_40 = arith.constant 0 : index
    %c0_41 = arith.constant 0 : index
    %129 = vector.load %arg5[%c0_40, %c0_41] : memref<1x128xf32, #tpu.memory_space<vmem>>, vector<1x128xf32>
    %c0_42 = arith.constant 0 : index
    %c0_43 = arith.constant 0 : index
    %130 = vector.load %arg6[%c0_42, %c0_43] : memref<1x128xf32, #tpu.memory_space<vmem>>, vector<1x128xf32>
    %131 = tpu.iota {dimensions = array<i32: 0>} : vector<32x1xi32>
    %c16_i32_44 = arith.constant 16 : i32
    %c0_i32_45 = arith.constant 0 : i32
    %132 = arith.cmpi eq, %c16_i32_44, %c0_i32_45 : i32
    %c1_i32_46 = arith.constant 1 : i32
    %133 = arith.select %132, %c1_i32_46, %c16_i32_44 : i32
    %134 = vector.broadcast %133 : i32 to vector<32x1xi32>
    %135 = arith.remsi %131, %134 : vector<32x1xi32>
    %c0_i32_47 = arith.constant 0 : i32
    %136 = vector.broadcast %c0_i32_47 : i32 to vector<32x1xi32>
    %137 = arith.cmpi ne, %135, %136 : vector<32x1xi32>
    %c0_i32_48 = arith.constant 0 : i32
    %138 = vector.broadcast %c0_i32_48 : i32 to vector<32x1xi32>
    %139 = arith.cmpi slt, %135, %138 : vector<32x1xi32>
    %c0_i32_49 = arith.constant 0 : i32
    %140 = arith.cmpi slt, %133, %c0_i32_49 : i32
    %141 = vector.broadcast %140 : i1 to vector<32x1xi1>
    %142 = vector.broadcast %141 : vector<32x1xi1> to vector<32x1xi1>
    %143 = arith.xori %139, %142 : vector<32x1xi1>
    %144 = arith.andi %143, %137 : vector<32x1xi1>
    %145 = vector.broadcast %133 : i32 to vector<32x1xi32>
    %146 = arith.addi %135, %145 : vector<32x1xi32>
    %147 = arith.select %144, %146, %135 : vector<32x1xi1>, vector<32x1xi32>
    %c12_i32 = arith.constant 12 : i32
    %148 = vector.broadcast %c12_i32 : i32 to vector<32x1xi32>
    %149 = arith.cmpi slt, %147, %148 : vector<32x1xi32>
    %150 = tpu.iota {dimensions = array<i32: 1>} : vector<1x128xi32>
    %c96_i32 = arith.constant 96 : i32
    %151 = vector.broadcast %c96_i32 : i32 to vector<1x128xi32>
    %152 = arith.cmpi slt, %150, %151 : vector<1x128xi32>
    %153 = vector.broadcast %149 : vector<32x1xi1> to vector<32x128xi1>
    %154 = vector.broadcast %152 : vector<1x128xi1> to vector<32x128xi1>
    %155 = arith.andi %153, %154 : vector<32x128xi1>
    %156 = arith.extui %155 : vector<32x128xi1> to vector<32x128xi32>
    %157 = arith.sitofp %156 : vector<32x128xi32> to vector<32x128xf32>
    %158 = tpu.iota {dimensions = array<i32: 0>} : vector<128x128xi32>
    %159 = tpu.iota {dimensions = array<i32: 1>} : vector<128x128xi32>
    %c8_i32_50 = arith.constant 8 : i32
    %c0_i32_51 = arith.constant 0 : i32
    %160 = arith.cmpi eq, %c8_i32_50, %c0_i32_51 : i32
    %c1_i32_52 = arith.constant 1 : i32
    %161 = arith.select %160, %c1_i32_52, %c8_i32_50 : i32
    %162 = vector.broadcast %161 : i32 to vector<128x128xi32>
    %163 = arith.remsi %158, %162 : vector<128x128xi32>
    %c0_i32_53 = arith.constant 0 : i32
    %164 = vector.broadcast %c0_i32_53 : i32 to vector<128x128xi32>
    %165 = arith.cmpi ne, %163, %164 : vector<128x128xi32>
    %c0_i32_54 = arith.constant 0 : i32
    %166 = vector.broadcast %c0_i32_54 : i32 to vector<128x128xi32>
    %167 = arith.cmpi slt, %163, %166 : vector<128x128xi32>
    %c0_i32_55 = arith.constant 0 : i32
    %168 = arith.cmpi slt, %161, %c0_i32_55 : i32
    %169 = vector.broadcast %168 : i1 to vector<128x128xi1>
    %170 = vector.broadcast %169 : vector<128x128xi1> to vector<128x128xi1>
    %171 = arith.xori %167, %170 : vector<128x128xi1>
    %172 = arith.andi %171, %165 : vector<128x128xi1>
    %173 = vector.broadcast %161 : i32 to vector<128x128xi32>
    %174 = arith.addi %163, %173 : vector<128x128xi32>
    %175 = arith.select %172, %174, %163 : vector<128x128xi1>, vector<128x128xi32>
    %c8_i32_56 = arith.constant 8 : i32
    %c0_i32_57 = arith.constant 0 : i32
    %176 = arith.cmpi eq, %c8_i32_56, %c0_i32_57 : i32
    %c1_i32_58 = arith.constant 1 : i32
    %177 = arith.select %176, %c1_i32_58, %c8_i32_56 : i32
    %178 = vector.broadcast %177 : i32 to vector<128x128xi32>
    %179 = arith.remsi %159, %178 : vector<128x128xi32>
    %c0_i32_59 = arith.constant 0 : i32
    %180 = vector.broadcast %c0_i32_59 : i32 to vector<128x128xi32>
    %181 = arith.cmpi ne, %179, %180 : vector<128x128xi32>
    %c0_i32_60 = arith.constant 0 : i32
    %182 = vector.broadcast %c0_i32_60 : i32 to vector<128x128xi32>
    %183 = arith.cmpi slt, %179, %182 : vector<128x128xi32>
    %c0_i32_61 = arith.constant 0 : i32
    %184 = arith.cmpi slt, %177, %c0_i32_61 : i32
    %185 = vector.broadcast %184 : i1 to vector<128x128xi1>
    %186 = vector.broadcast %185 : vector<128x128xi1> to vector<128x128xi1>
    %187 = arith.xori %183, %186 : vector<128x128xi1>
    %188 = arith.andi %187, %181 : vector<128x128xi1>
    %189 = vector.broadcast %177 : i32 to vector<128x128xi32>
    %190 = arith.addi %179, %189 : vector<128x128xi32>
    %191 = arith.select %188, %190, %179 : vector<128x128xi1>, vector<128x128xi32>
    %192 = arith.cmpi eq, %175, %191 : vector<128x128xi32>
    %193 = arith.extui %192 : vector<128x128xi1> to vector<128x128xi32>
    %194 = arith.sitofp %193 : vector<128x128xi32> to vector<128x128xf32>
    %195 = arith.mulf %128, %157 : vector<32x128xf32>
    %cst_62 = arith.constant dense<0.000000e+00> : vector<32x128xf32>
    %196 = tpu.matmul %195, %194, %cst_62 {dimension_numbers = #tpu.dot_dimension_numbers<[1], [0], [0], [1], [0, 0, 1, 1], [], []>} : vector<32x128xf32>, vector<128x128xf32>, vector<32x128xf32> -> vector<32x128xf32>
    %cst_63 = arith.constant dense<0.000000e+00> : vector<128xf32>
    %197 = vector.multi_reduction <add>, %196, %cst_63 [0] : vector<32x128xf32> to vector<128xf32>
    %198 = vector.shape_cast %197 : vector<128xf32> to vector<1x128xf32>
    %199 = arith.mulf %195, %128 : vector<32x128xf32>
    %cst_64 = arith.constant dense<0.000000e+00> : vector<32x128xf32>
    %200 = tpu.matmul %199, %194, %cst_64 {dimension_numbers = #tpu.dot_dimension_numbers<[1], [0], [0], [1], [0, 0, 1, 1], [], []>} : vector<32x128xf32>, vector<128x128xf32>, vector<32x128xf32> -> vector<32x128xf32>
    %cst_65 = arith.constant dense<0.000000e+00> : vector<128xf32>
    %201 = vector.multi_reduction <add>, %200, %cst_65 [0] : vector<32x128xf32> to vector<128xf32>
    %202 = vector.shape_cast %201 : vector<128xf32> to vector<1x128xf32>
    %cst_66 = arith.constant 0.00347222225 : f32
    %203 = vector.broadcast %cst_66 : f32 to vector<1x128xf32>
    %204 = arith.mulf %198, %203 : vector<1x128xf32>
    %cst_67 = arith.constant 0.00347222225 : f32
    %205 = vector.broadcast %cst_67 : f32 to vector<1x128xf32>
    %206 = arith.mulf %202, %205 : vector<1x128xf32>
    %207 = arith.mulf %204, %204 : vector<1x128xf32>
    %208 = arith.subf %206, %207 : vector<1x128xf32>
    %cst_68 = arith.constant 0.000000e+00 : f32
    %209 = vector.broadcast %cst_68 : f32 to vector<1x128xf32>
    %210 = arith.maximumf %208, %209 : vector<1x128xf32>
    %cst_69 = arith.constant 9.99999974E-6 : f32
    %211 = vector.broadcast %cst_69 : f32 to vector<1x128xf32>
    %212 = arith.addf %210, %211 : vector<1x128xf32>
    %213 = math.rsqrt %212 : vector<1x128xf32>
    %214 = arith.mulf %129, %213 : vector<1x128xf32>
    %215 = arith.mulf %204, %214 : vector<1x128xf32>
    %216 = arith.subf %130, %215 : vector<1x128xf32>
    %217 = vector.broadcast %214 : vector<1x128xf32> to vector<32x128xf32>
    %218 = arith.mulf %128, %217 : vector<32x128xf32>
    %219 = vector.broadcast %216 : vector<1x128xf32> to vector<32x128xf32>
    %220 = arith.addf %218, %219 : vector<32x128xf32>
    %cst_70 = arith.constant 0.000000e+00 : f32
    %221 = vector.broadcast %cst_70 : f32 to vector<32x128xf32>
    %222 = arith.maximumf %220, %221 : vector<32x128xf32>
    %c0_71 = arith.constant 0 : index
    %c0_72 = arith.constant 0 : index
    %223 = vector.load %arg7[%c0_71, %c0_72] : memref<32x128xf32, #tpu.memory_space<vmem>>, vector<32x128xf32>
    tpu.vector_store %arg7[%c0_71, %c0_72], %222 {strides = array<i32>} : memref<32x128xf32, #tpu.memory_space<vmem>>, vector<32x128xf32>,
    return
  }
}

</mosaic_0001>

<llo_original>
// kernel: tile.23
$region0: #{tile.23}
  #allocation0 [shape = 's32[1]{0}', space=sflag, size = 0x4, scoped, tag = 'scoped memory for tile.23']
  %s0 = inlined_call_operand.vmem [shape: f32[8], index: 0, kind: input, shape index: {}]
  %s1 = inlined_call_operand.vmem [shape: f32[16,8], index: 1, kind: output, shape index: {}]
  // Predicated region
  $region2: #{tile.23} parent=0 // pred_check
    _
  $region3: #{tile.23} parent=0 // pred_check_branch
    %3 = sbr.rel (0) target = $region5
  $region4: #{tile.23} parent=0 // pred_region
    _
  $region5: #{tile.23} parent=0 // pred_fallthru
    _
  %v4 = vld [vmem:[%s0] ss:$0 sm:$0xff]
  %5 = vst [vmem:[%s1] sm:$0xff] %v4
  %s6 = scalar_lea.vmem %s1, 8
  %7 = vst [vmem:[%s6] sm:$0xff] %v4

// kernel: tile.24
$region0: #{tile.24}
  %s0 = inlined_call_operand.vmem [shape: f32[16,8], index: 0, kind: input, shape index: {}]
  %s1 = inlined_call_operand.vmem [shape: f32[1,128], index: 1, kind: output, shape index: {}]
  $region1: #{tile.24} parent=0
    #allocation0 [shape = 'u8[4096]{0}', space=vmem, size = 0x1000, scoped, tag = 'scoped mem for output reshape']
    %v2 = vld [vmem:[%s0] sm:$0x1]
    %vm3 = vcmask 64512
    %4 = vst.msk [vmem:[#allocation0] sm:$0x1] %vm3, %v2
    %s5 = scalar_lea.vmem %s0, 15
    %v6 = vld [vmem:[%s5] sm:$0x1]
    %7 = vrot.lane.b32.xlu0 %v6, 120
    %v8 = vpop.permute.xlu0 %7
    %vm9 = vcmask 1048512
    %10 = vst.msk [vmem:[#allocation0] sm:$0x1] %vm9, %v8
    %s11 = scalar_lea.vmem %s0, 14
    %v12 = vld [vmem:[%s11] sm:$0x1]
    %13 = vrot.lane.b32.xlu0 %v12, 112
    %v14 = vpop.permute.xlu0 %13
    %vm15 = vcmask 982912
    %16 = vst.msk [vmem:[#allocation0] sm:$0x1] %vm15, %v14
    %s17 = scalar_lea.vmem %s0, 13
    %v18 = vld [vmem:[%s17] sm:$0x1]
    %19 = vrot.lane.b32.xlu0 %v18, 104
    %v20 = vpop.permute.xlu0 %19
    %vm21 = vcmask 917312
    %22 = vst.msk [vmem:[#allocation0] sm:$0x1] %vm21, %v20
    %s23 = scalar_lea.vmem %s0, 12
    %v24 = vld [vmem:[%s23] sm:$0x1]
    %25 = vrot.lane.b32.xlu0 %v24, 96
    %v26 = vpop.permute.xlu0 %25
    %vm27 = vcmask 851712
    %28 = vst.msk [vmem:[#allocation0] sm:$0x1] %vm27, %v26
    %s29 = scalar_lea.vmem %s0, 11
    %v30 = vld [vmem:[%s29] sm:$0x1]
    %31 = vrot.lane.b32.xlu0 %v30, 88
    %v32 = vpop.permute.xlu0 %31
    %vm33 = vcmask 786112
    %34 = vst.msk [vmem:[#allocation0] sm:$0x1] %vm33, %v32
    %s35 = scalar_lea.vmem %s0, 10
    %v36 = vld [vmem:[%s35] sm:$0x1]
    %37 = vrot.lane.b32.xlu0 %v36, 80
    %v38 = vpop.permute.xlu0 %37
    %vm39 = vcmask 720512
    %40 = vst.msk [vmem:[#allocation0] sm:$0x1] %vm39, %v38
    %s41 = scalar_lea.vmem %s0, 9
    %v42 = vld [vmem:[%s41] sm:$0x1]
    %43 = vrot.lane.b32.xlu0 %v42, 72
    %v44 = vpop.permute.xlu0 %43
    %vm45 = vcmask 654912
    %46 = vst.msk [vmem:[#allocation0] sm:$0x1] %vm45, %v44
    %s47 = scalar_lea.vmem %s0, 8
    %v48 = vld [vmem:[%s47] sm:$0x1]
    %49 = vrot.lane.b32.xlu0 %v48, 64
    %v50 = vpop.permute.xlu0 %49
    %vm51 = vcmask 589312
    %52 = vst.msk [vmem:[#allocation0] sm:$0x1] %vm51, %v50
    %s53 = scalar_lea.vmem %s0, 7
    %v54 = vld [vmem:[%s53] sm:$0x1]
    %55 = vrot.lane.b32.xlu0 %v54, 56
    %v56 = vpop.permute.xlu0 %55
    %vm57 = vcmask 523712
    %58 = vst.msk [vmem:[#allocation0] sm:$0x1] %vm57, %v56
    %s59 = scalar_lea.vmem %s0, 6
    %v60 = vld [vmem:[%s59] sm:$0x1]
    %61 = vrot.lane.b32.xlu0 %v60, 48
    %v62 = vpop.permute.xlu0 %61
    %vm63 = vcmask 458112
    %64 = vst.msk [vmem:[#allocation0] sm:$0x1] %vm63, %v62
    %s65 = scalar_lea.vmem %s0, 5
    %v66 = vld [vmem:[%s65] sm:$0x1]
    %67 = vrot.lane.b32.xlu0 %v66, 40
    %v68 = vpop.permute.xlu0 %67
    %vm69 = vcmask 392512
    %70 = vst.msk [vmem:[#allocation0] sm:$0x1] %vm69, %v68
    %s71 = scalar_lea.vmem %s0, 4
    %v72 = vld [vmem:[%s71] sm:$0x1]
    %73 = vrot.lane.b32.xlu0 %v72, 32
    %v74 = vpop.permute.xlu0 %73
    %vm75 = vcmask 326912
    %76 = vst.msk [vmem:[#allocation0] sm:$0x1] %vm75, %v74
    %s77 = scalar_lea.vmem %s0, 3
    %v78 = vld [vmem:[%s77] sm:$0x1]
    %79 = vrot.lane.b32.xlu0 %v78, 24
    %v80 = vpop.permute.xlu0 %79
    %vm81 = vcmask 261312
    %82 = vst.msk [vmem:[#allocation0] sm:$0x1] %vm81, %v80
    %s83 = scalar_lea.vmem %s0, 2
    %v84 = vld [vmem:[%s83] sm:$0x1]
    %85 = vrot.lane.b32.xlu0 %v84, 16
    %v86 = vpop.permute.xlu0 %85
    %vm87 = vcmask 195712
    %88 = vst.msk [vmem:[#allocation0] sm:$0x1] %vm87, %v86
    %s89 = scalar_lea.vmem %s0, 1
    %v90 = vld [vmem:[%s89] sm:$0x1]
    %91 = vrot.lane.b32.xlu0 %v90, 8
    %v92 = vpop.permute.xlu0 %91
    %vm93 = vcmask 130112
    %94 = vst.msk [vmem:[#allocation0] sm:$0x1] %vm93, %v92
    %s96 = sshll.u32 1, 1
    %s97 = ssub.s32 %s96, 1
    %v99 = vld [vmem:[#allocation0] sm:%s97]
    %s100 = sshll.u32 1, 1
    %s101 = ssub.s32 %s100, 1
    %102 = vst [vmem:[%s1] sm:%s101] %v99

// kernel: plain_cnn_forward.1
$region0: #{plain_cnn_forward.1}
  #allocation0 [shape = 'u32[]', space=smem, size = 0x4, offset = 0x4, fixed_abs, tag = 'smem constant byte address 0x4 - core index']
  #allocation1 [shape = 'u32[144,128]{1,0:T(1,128)}', space=vmem, size = 0x12000, scoped, tag = 'internal scratch']
  %s0 = inlined_call_operand.vmem [shape: f32[32,128], index: 0, kind: input, shape index: {}]
  %s1 = inlined_call_operand.vmem [shape: f32[384,128], index: 1, kind: input, shape index: {}]
  %s2 = inlined_call_operand.vmem [shape: f32[384,128], index: 2, kind: input, shape index: {}]
  %s3 = inlined_call_operand.vmem [shape: f32[1,128], index: 3, kind: input, shape index: {}]
  %s4 = inlined_call_operand.vmem [shape: f32[1,128], index: 4, kind: input, shape index: {}]
  %s5 = inlined_call_operand.vmem [shape: f32[1,128], index: 5, kind: input, shape index: {}]
  %s6 = inlined_call_operand.vmem [shape: f32[1,128], index: 6, kind: input, shape index: {}]
  %s7 = inlined_call_operand.vmem [shape: f32[32,128], index: 7, kind: output, shape index: {}]
  %s8 = sld [smem:[#allocation0]]
  $region38: #{plain_cnn_forward.1} parent=0
    _
  %s10 = ssub.s32 1, %s8
  %s11 = scalar_select 0, %s10, %s8
  // Predicated region
  $region2: #{plain_cnn_forward.1} parent=0 // pred_check
    _
  $region3: #{plain_cnn_forward.1} parent=0 // pred_check_branch
    %13 = sbr.rel (0) target = $region5
  $region4: #{plain_cnn_forward.1} parent=0 // pred_region
    _
  $region5: #{plain_cnn_forward.1} parent=0 // pred_fallthru
    _
  // Predicated region
  $region6: #{plain_cnn_forward.1} parent=0 // pred_check
    _
  $region7: #{plain_cnn_forward.1} parent=0 // pred_check_branch
    %15 = sbr.rel (0) target = $region9
  $region8: #{plain_cnn_forward.1} parent=0 // pred_region
    _
  $region9: #{plain_cnn_forward.1} parent=0 // pred_fallthru
    _
  // Predicated region
  $region10: #{plain_cnn_forward.1} parent=0 // pred_check
    _
  $region11: #{plain_cnn_forward.1} parent=0 // pred_check_branch
    %17 = sbr.rel (0) target = $region13
  $region12: #{plain_cnn_forward.1} parent=0 // pred_region
    _
  $region13: #{plain_cnn_forward.1} parent=0 // pred_fallthru
    _
  // Predicated region
  $region14: #{plain_cnn_forward.1} parent=0 // pred_check
    _
  $region15: #{plain_cnn_forward.1} parent=0 // pred_check_branch
    %19 = sbr.rel (0) target = $region17
  $region16: #{plain_cnn_forward.1} parent=0 // pred_region
    _
  $region17: #{plain_cnn_forward.1} parent=0 // pred_fallthru
    _
  // Predicated region
  $region18: #{plain_cnn_forward.1} parent=0 // pred_check
    _
  $region19: #{plain_cnn_forward.1} parent=0 // pred_check_branch
    %21 = sbr.rel (0) target = $region21
  $region20: #{plain_cnn_forward.1} parent=0 // pred_region
    _
  $region21: #{plain_cnn_forward.1} parent=0 // pred_fallthru
    _
  // Predicated region
  $region22: #{plain_cnn_forward.1} parent=0 // pred_check
    _
  $region23: #{plain_cnn_forward.1} parent=0 // pred_check_branch
    %23 = sbr.rel (0) target = $region25
  $region24: #{plain_cnn_forward.1} parent=0 // pred_region
    _
  $region25: #{plain_cnn_forward.1} parent=0 // pred_fallthru
    _
  // Predicated region
  $region26: #{plain_cnn_forward.1} parent=0 // pred_check
    _
  $region27: #{plain_cnn_forward.1} parent=0 // pred_check_branch
    %25 = sbr.rel (0) target = $region29
  $region28: #{plain_cnn_forward.1} parent=0 // pred_region
    _
  $region29: #{plain_cnn_forward.1} parent=0 // pred_fallthru
    _
  %v26 = vld [vmem:[%s0] sm:$0xff]
  %v27 = vld [vmem:[%s0 + $0x8] sm:$0xff]
  %v28 = vld [vmem:[%s0 + $0x10] sm:$0xff]
  %v29 = vld [vmem:[%s0 + $0x18] sm:$0xff]
  %v30 = vlaneseq
  %v31 = vshrl.u32 %v30, 7
  %v32 = vadd.s32 %v31, 8
  %v33 = vadd.s32 %v31, 16
  %v34 = vadd.s32 %v31, 24
  %v35 = vlaneseq
  %v36 = vand.u32 %v35, 127
  %v37 = vadd.s32 %v31, 1
  %v38 = vadd.s32 %v32, 1
  %v39 = vadd.s32 %v33, 1
  %v40 = vadd.s32 %v34, 1
  %vm41 = vcmp.eq.s32.totalorder %v36, %v37
  %vm42 = vcmp.eq.s32.totalorder %v36, %v38
  %vm43 = vcmp.eq.s32.totalorder %v36, %v39
  %vm44 = vcmp.eq.s32.totalorder %v36, %v40
  %v45 = vsel %vm41, 1, 0
  %v46 = vsel %vm42, 1, 0
  %v47 = vsel %vm43, 1, 0
  %v48 = vsel %vm44, 1, 0
  %v49 = vcvt.s32.f32 %v45
  %v50 = vcvt.s32.f32 %v46
  %v51 = vcvt.s32.f32 %v47
  %v52 = vcvt.s32.f32 %v48
  %vm53 = vcmask 261120
  %v55 = vsel %vm53, %v49, 0
  %v58 = vsel %vm53, %v50, 0
  %v61 = vsel %vm53, %v51, 0
  %v64 = vsel %vm53, %v52, 0
  %66 = vmatprep.subr.mxu0 0.0
  %67 = vmatpush1.msra.mxu0 0.0
  %68 = vmatprep.subr.mxu0 0.0
  %69 = vmatpush1.msra.mxu0 0.0
  %70 = vmatprep.subr.mxu0 0.0
  %71 = vmatpush1.msra.mxu0 0.0
  %72 = vmatprep.subr.mxu0 0.0
  %73 = vmatpush1.msra.mxu0 0.0
  %74 = vmatprep.subr.mxu0 0.0
  %75 = vmatpush1.msra.mxu0 0.0
  %76 = vmatprep.subr.mxu0 0.0
  %77 = vmatpush1.msra.mxu0 0.0
  %78 = vmatprep.subr.mxu0 0.0
  %79 = vmatpush1.msra.mxu0 0.0
  %80 = vmatprep.subr.mxu0 0.0
  %81 = vmatpush1.msra.mxu0 0.0
  %82 = vmatprep.subr.mxu0 0.0
  %83 = vmatpush1.msra.mxu0 0.0
  %84 = vmatprep.subr.mxu0 0.0
  %85 = vmatpush1.msra.mxu0 0.0
  %86 = vmatprep.subr.mxu0 0.0
  %87 = vmatpush1.msra.mxu0 0.0
  %88 = vmatprep.subr.mxu0 0.0
  %89 = vmatpush1.msra.mxu0 0.0
  %90 = vmatprep.subr.mxu0 0.0
  %91 = vmatpush1.msra.mxu0 %v29
  %92 = vmatprep.subr.mxu0 0.0
  %93 = vmatpush1.msra.mxu0 %v28
  %94 = vmatprep.subr.mxu0 0.0
  %95 = vmatpush1.msra.mxu0 %v27
  %96 = vmatprep.subr.mxu0 0.0
  %97 = vmatpush1.msra.mxu0 %v26
  %98 = vmatprep.subr.mxu0 0.0
  %99 = vmatpush2.msra.mxu0 0.0
  %100 = vmatprep.subr.mxu0 0.0
  %101 = vmatpush2.msra.mxu0 0.0
  %102 = vmatprep.subr.mxu0 0.0
  %103 = vmatpush2.msra.mxu0 0.0
  %104 = vmatprep.subr.mxu0 0.0
  %105 = vmatpush2.msra.mxu0 0.0
  %106 = vmatprep.subr.mxu0 0.0
  %107 = vmatpush2.msra.mxu0 0.0
  %108 = vmatprep.subr.mxu0 0.0
  %109 = vmatpush2.msra.mxu0 0.0
  %110 = vmatprep.subr.mxu0 0.0
  %111 = vmatpush2.msra.mxu0 0.0
  %112 = vmatprep.subr.mxu0 0.0
  %113 = vmatpush2.msra.mxu0 0.0
  %114 = vmatprep.subr.mxu0 0.0
  %115 = vmatpush2.msra.mxu0 0.0
  %116 = vmatprep.subr.mxu0 0.0
  %117 = vmatpush2.msra.mxu0 0.0
  %118 = vmatprep.subr.mxu0 0.0
  %119 = vmatpush2.msra.mxu0 0.0
  %120 = vmatprep.subr.mxu0 0.0
  %121 = vmatpush2.msra.mxu0 0.0
  %122 = vmatprep.subr.mxu0 0.0
  %123 = vmatpush2.msra.mxu0 0.0
  %124 = vmatprep.subr.mxu0 0.0
  %125 = vmatpush2.msra.mxu0 0.0
  %126 = vmatprep.subr.mxu0 0.0
  %127 = vmatpush2.msra.mxu0 0.0
  %128 = vmatprep.subr.mxu0 0.0
  %129 = vmatpush2.msra.mxu0 0.0
  %130 = vmatprep.mubr.f32.mxu0 0.0
  %131 = vmatmul.mubr.f32.gmra.mxu0 %v55
  %v132 = vpop.f32.mrf.mxu0
  %v133 = vadd.f32 0.0, %v132
  %v134 = vpop.f32.mrf.mxu0
  %135 = vmatprep.mubr.f32.mxu0 0.0
  %136 = vmatmul.mubr.f32.gmra.mxu0 %v58
  %v137 = vpop.f32.mrf.mxu0
  %v138 = vadd.f32 0.0, %v137
  %v139 = vpop.f32.mrf.mxu0
  %140 = vmatprep.mubr.f32.mxu0 0.0
  %141 = vmatmul.mubr.f32.gmra.mxu0 %v61
  %v142 = vpop.f32.mrf.mxu0
  %v143 = vadd.f32 0.0, %v142
  %v144 = vpop.f32.mrf.mxu0
  %145 = vmatprep.mubr.f32.mxu0 0.0
  %146 = vmatmul.mubr.f32.gmra.mxu0 %v64
  %v147 = vpop.f32.mrf.mxu0
  %v148 = vadd.f32 0.0, %v147
  %v149 = vpop.f32.mrf.mxu0
  %150 = vdwg.mxu0
  %v151 = vadd.s32 %v31, 2
  %v152 = vadd.s32 %v32, 2
  %v153 = vadd.s32 %v33, 2
  %v154 = vadd.s32 %v34, 2
  %vm155 = vcmp.eq.s32.totalorder %v36, %v151
  %vm156 = vcmp.eq.s32.totalorder %v36, %v152
  %vm157 = vcmp.eq.s32.totalorder %v36, %v153
  %vm158 = vcmp.eq.s32.totalorder %v36, %v154
  %v159 = vsel %vm155, 1, 0
  %v160 = vsel %vm156, 1, 0
  %v161 = vsel %vm157, 1, 0
  %v162 = vsel %vm158, 1, 0
  %v163 = vcvt.s32.f32 %v159
  %v164 = vcvt.s32.f32 %v160
  %v165 = vcvt.s32.f32 %v161
  %v166 = vcvt.s32.f32 %v162
  %v168 = vsel %vm53, %v163, 0
  %v171 = vsel %vm53, %v164, 0
  %v174 = vsel %vm53, %v165, 0
  %v177 = vsel %vm53, %v166, 0
  %179 = vmatprep.subr.mxu0 0.0
  %180 = vmatpush1.msra.mxu0 0.0
  %181 = vmatprep.subr.mxu0 0.0
  %182 = vmatpush1.msra.mxu0 0.0
  %183 = vmatprep.subr.mxu0 0.0
  %184 = vmatpush1.msra.mxu0 0.0
  %185 = vmatprep.subr.mxu0 0.0
  %186 = vmatpush1.msra.mxu0 0.0
  %187 = vmatprep.subr.mxu0 0.0
  %188 = vmatpush1.msra.mxu0 0.0
  %189 = vmatprep.subr.mxu0 0.0
  %190 = vmatpush1.msra.mxu0 0.0
  %191 = vmatprep.subr.mxu0 0.0
  %192 = vmatpush1.msra.mxu0 0.0
  %193 = vmatprep.subr.mxu0 0.0
  %194 = vmatpush1.msra.mxu0 0.0
  %195 = vmatprep.subr.mxu0 0.0
  %196 = vmatpush1.msra.mxu0 0.0
  %197 = vmatprep.subr.mxu0 0.0
  %198 = vmatpush1.msra.mxu0 0.0
  %199 = vmatprep.subr.mxu0 0.0
  %200 = vmatpush1.msra.mxu0 0.0
  %201 = vmatprep.subr.mxu0 0.0
  %202 = vmatpush1.msra.mxu0 0.0
  %203 = vmatprep.subr.mxu0 0.0
  %204 = vmatpush1.msra.mxu0 %v29
  %205 = vmatprep.subr.mxu0 0.0
  %206 = vmatpush1.msra.mxu0 %v28
  %207 = vmatprep.subr.mxu0 0.0
  %208 = vmatpush1.msra.mxu0 %v27
  %209 = vmatprep.subr.mxu0 0.0
  %210 = vmatpush1.msra.mxu0 %v26
  %211 = vmatprep.subr.mxu0 0.0
  %212 = vmatpush2.msra.mxu0 0.0
  %213 = vmatprep.subr.mxu0 0.0
  %214 = vmatpush2.msra.mxu0 0.0
  %215 = vmatprep.subr.mxu0 0.0
  %216 = vmatpush2.msra.mxu0 0.0
  %217 = vmatprep.subr.mxu0 0.0
  %218 = vmatpush2.msra.mxu0 0.0
  %219 = vmatprep.subr.mxu0 0.0
  %220 = vmatpush2.msra.mxu0 0.0
  %221 = vmatprep.subr.mxu0 0.0
  %222 = vmatpush2.msra.mxu0 0.0
  %223 = vmatprep.subr.mxu0 0.0
  %224 = vmatpush2.msra.mxu0 0.0
  %225 = vmatprep.subr.mxu0 0.0
  %226 = vmatpush2.msra.mxu0 0.0
  %227 = vmatprep.subr.mxu0 0.0
  %228 = vmatpush2.msra.mxu0 0.0
  %229 = vmatprep.subr.mxu0 0.0
  %230 = vmatpush2.msra.mxu0 0.0
  %231 = vmatprep.subr.mxu0 0.0
  %232 = vmatpush2.msra.mxu0 0.0
  %233 = vmatprep.subr.mxu0 0.0
  %234 = vmatpush2.msra.mxu0 0.0
  %235 = vmatprep.subr.mxu0 0.0
  %236 = vmatpush2.msra.mxu0 0.0
  %237 = vmatprep.subr.mxu0 0.0
  %238 = vmatpush2.msra.mxu0 0.0
  %239 = vmatprep.subr.mxu0 0.0
  %240 = vmatpush2.msra.mxu0 0.0
  %241 = vmatprep.subr.mxu0 0.0
  %242 = vmatpush2.msra.mxu0 0.0
  %243 = vmatprep.mubr.f32.mxu0 0.0
  %244 = vmatmul.mubr.f32.gmra.mxu0 %v168
  %v245 = vpop.f32.mrf.mxu0
  %v246 = vadd.f32 0.0, %v245
  %v247 = vpop.f32.mrf.mxu0
  %248 = vmatprep.mubr.f32.mxu0 0.0
  %249 = vmatmul.mubr.f32.gmra.mxu0 %v171
  %v250 = vpop.f32.mrf.mxu0
  %v251 = vadd.f32 0.0, %v250
  %v252 = vpop.f32.mrf.mxu0
  %253 = vmatprep.mubr.f32.mxu0 0.0
  %254 = vmatmul.mubr.f32.gmra.mxu0 %v174
  %v255 = vpop.f32.mrf.mxu0
  %v256 = vadd.f32 0.0, %v255
  %v257 = vpop.f32.mrf.mxu0
  %258 = vmatprep.mubr.f32.mxu0 0.0
  %259 = vmatmul.mubr.f32.gmra.mxu0 %v177
  %v260 = vpop.f32.mrf.mxu0
  %v261 = vadd.f32 0.0, %v260
  %v262 = vpop.f32.mrf.mxu0
  %263 = vdwg.mxu0
  %v264 = vld [vmem:[%s1] sm:$0xff]
  %v265 = vld [vmem:[%s1 + $0x8] sm:$0xff]
  %v266 = vld [vmem:[%s1 + $0x10] sm:$0xff]
  %v267 = vld [vmem:[%s1 + $0x18] sm:$0xff]
  %v268 = vld [vmem:[%s1 + $0x20] sm:$0xff]
  %v269 = vld [vmem:[%s1 + $0x28] sm:$0xff]
  %v270 = vld [vmem:[%s1 + $0x30] sm:$0xff]
  %v271 = vld [vmem:[%s1 + $0x38] sm:$0xff]
  %v272 = vld [vmem:[%s1 + $0x40] sm:$0xff]
  %v273 = vld [vmem:[%s1 + $0x48] sm:$0xff]
  %v274 = vld [vmem:[%s1 + $0x50] sm:$0xff]
  %v275 = vld [vmem:[%s1 + $0x58] sm:$0xff]
  %v276 = vld [vmem:[%s1 + $0x60] sm:$0xff]
  %v277 = vld [vmem:[%s1 + $0x68] sm:$0xff]
  %v278 = vld [vmem:[%s1 + $0x70] sm:$0xff]
  %v279 = vld [vmem:[%s1 + $0x78] sm:$0xff]
  %v280 = vld [vmem:[%s1 + $0x80] sm:$0xff]
  %v281 = vld [vmem:[%s1 + $0x88] sm:$0xff]
  %v282 = vld [vmem:[%s1 + $0x90] sm:$0xff]
  %v283 = vld [vmem:[%s1 + $0x98] sm:$0xff]
  %v284 = vld [vmem:[%s1 + $0xa0] sm:$0xff]
  %v285 = vld [vmem:[%s1 + $0xa8] sm:$0xff]
  %v286 = vld [vmem:[%s1 + $0xb0] sm:$0xff]
  %v287 = vld [vmem:[%s1 + $0xb8] sm:$0xff]
  %v288 = vld [vmem:[%s1 + $0xc0] sm:$0xff]
  %v289 = vld [vmem:[%s1 + $0xc8] sm:$0xff]
  %v290 = vld [vmem:[%s1 + $0xd0] sm:$0xff]
  %v291 = vld [vmem:[%s1 + $0xd8] sm:$0xff]
  %v292 = vld [vmem:[%s1 + $0xe0] sm:$0xff]
  %v293 = vld [vmem:[%s1 + $0xe8] sm:$0xff]
  %v294 = vld [vmem:[%s1 + $0xf0] sm:$0xff]
  %v295 = vld [vmem:[%s1 + $0xf8] sm:$0xff]
  %v296 = vld [vmem:[%s1 + $0x100] sm:$0xff]
  %v297 = vld [vmem:[%s1 + $0x108] sm:$0xff]
  %v298 = vld [vmem:[%s1 + $0x110] sm:$0xff]
  %v299 = vld [vmem:[%s1 + $0x118] sm:$0xff]
  %v300 = vld [vmem:[%s1 + $0x120] sm:$0xff]
  %v301 = vld [vmem:[%s1 + $0x128] sm:$0xff]
  %v302 = vld [vmem:[%s1 + $0x130] sm:$0xff]
  %v303 = vld [vmem:[%s1 + $0x138] sm:$0xff]
  %v304 = vld [vmem:[%s1 + $0x140] sm:$0xff]
  %v305 = vld [vmem:[%s1 + $0x148] sm:$0xff]
  %v306 = vld [vmem:[%s1 + $0x150] sm:$0xff]
  %v307 = vld [vmem:[%s1 + $0x158] sm:$0xff]
  %v308 = vld [vmem:[%s1 + $0x160] sm:$0xff]
  %v309 = vld [vmem:[%s1 + $0x168] sm:$0xff]
  %v310 = vld [vmem:[%s1 + $0x170] sm:$0xff]
  %v311 = vld [vmem:[%s1 + $0x178] sm:$0xff]
  %312 = vmatprep.subr.mxu0 0.0
  %313 = vmatpush1.msra.mxu0 %v279
  %314 = vmatprep.subr.mxu0 0.0
  %315 = vmatpush1.msra.mxu0 %v278
  %316 = vmatprep.subr.mxu0 0.0
  %317 = vmatpush1.msra.mxu0 %v277
  %318 = vmatprep.subr.mxu0 0.0
  %319 = vmatpush1.msra.mxu0 %v276
  %320 = vmatprep.subr.mxu0 0.0
  %321 = vmatpush1.msra.mxu0 %v275
  %322 = vmatprep.subr.mxu0 0.0
  %323 = vmatpush1.msra.mxu0 %v274
  %324 = vmatprep.subr.mxu0 0.0
  %325 = vmatpush1.msra.mxu0 %v273
  %326 = vmatprep.subr.mxu0 0.0
  %327 = vmatpush1.msra.mxu0 %v272
  %328 = vmatprep.subr.mxu0 0.0
  %329 = vmatpush1.msra.mxu0 %v271
  %330 = vmatprep.subr.mxu0 0.0
  %331 = vmatpush1.msra.mxu0 %v270
  %332 = vmatprep.subr.mxu0 0.0
  %333 = vmatpush1.msra.mxu0 %v269
  %334 = vmatprep.subr.mxu0 0.0
  %335 = vmatpush1.msra.mxu0 %v268
  %336 = vmatprep.subr.mxu0 0.0
  %337 = vmatpush1.msra.mxu0 %v267
  %338 = vmatprep.subr.mxu0 0.0
  %339 = vmatpush1.msra.mxu0 %v266
  %340 = vmatprep.subr.mxu0 0.0
  %341 = vmatpush1.msra.mxu0 %v265
  %342 = vmatprep.subr.mxu0 0.0
  %343 = vmatpush1.msra.mxu0 %v264
  %344 = vmatprep.subr.mxu0 0.0
  %345 = vmatpush2.msra.mxu0 %v295
  %346 = vmatprep.subr.mxu0 0.0
  %347 = vmatpush2.msra.mxu0 %v294
  %348 = vmatprep.subr.mxu0 0.0
  %349 = vmatpush2.msra.mxu0 %v293
  %350 = vmatprep.subr.mxu0 0.0
  %351 = vmatpush2.msra.mxu0 %v292
  %352 = vmatprep.subr.mxu0 0.0
  %353 = vmatpush2.msra.mxu0 %v291
  %354 = vmatprep.subr.mxu0 0.0
  %355 = vmatpush2.msra.mxu0 %v290
  %356 = vmatprep.subr.mxu0 0.0
  %357 = vmatpush2.msra.mxu0 %v289
  %358 = vmatprep.subr.mxu0 0.0
  %359 = vmatpush2.msra.mxu0 %v288
  %360 = vmatprep.subr.mxu0 0.0
  %361 = vmatpush2.msra.mxu0 %v287
  %362 = vmatprep.subr.mxu0 0.0
  %363 = vmatpush2.msra.mxu0 %v286
  %364 = vmatprep.subr.mxu0 0.0
  %365 = vmatpush2.msra.mxu0 %v285
  %366 = vmatprep.subr.mxu0 0.0
  %367 = vmatpush2.msra.mxu0 %v284
  %368 = vmatprep.subr.mxu0 0.0
  %369 = vmatpush2.msra.mxu0 %v283
  %370 = vmatprep.subr.mxu0 0.0
  %371 = vmatpush2.msra.mxu0 %v282
  %372 = vmatprep.subr.mxu0 0.0
  %373 = vmatpush2.msra.mxu0 %v281
  %374 = vmatprep.subr.mxu0 0.0
  %375 = vmatpush2.msra.mxu0 %v280
  %376 = vmatprep.mubr.f32.mxu0 %v133
  %377 = vmatmul.mubr.f32.gmra.mxu0 %v26
  %v378 = vpop.f32.mrf.mxu0
  %v379 = vadd.f32 0.0, %v378
  %v380 = vpop.f32.mrf.mxu0
  %381 = vmatprep.mubr.f32.mxu0 %v138
  %382 = vmatmul.mubr.f32.gmra.mxu0 %v27
  %v383 = vpop.f32.mrf.mxu0
  %v384 = vadd.f32 0.0, %v383
  %v385 = vpop.f32.mrf.mxu0
  %386 = vmatprep.mubr.f32.mxu0 %v143
  %387 = vmatmul.mubr.f32.gmra.mxu0 %v28
  %v388 = vpop.f32.mrf.mxu0
  %v389 = vadd.f32 0.0, %v388
  %v390 = vpop.f32.mrf.mxu0
  %391 = vmatprep.mubr.f32.mxu0 %v148
  %392 = vmatmul.mubr.f32.gmra.mxu0 %v29
  %v393 = vpop.f32.mrf.mxu0
  %v394 = vadd.f32 0.0, %v393
  %v395 = vpop.f32.mrf.mxu0
  %396 = vdwg.mxu0
  %397 = vmatprep.subr.mxu0 0.0
  %398 = vmatpush1.msra.mxu0 %v311
  %399 = vmatprep.subr.mxu0 0.0
  %400 = vmatpush1.msra.mxu0 %v310
  %401 = vmatprep.subr.mxu0 0.0
  %402 = vmatpush1.msra.mxu0 %v309
  %403 = vmatprep.subr.mxu0 0.0
  %404 = vmatpush1.msra.mxu0 %v308
  %405 = vmatprep.subr.mxu0 0.0
  %406 = vmatpush1.msra.mxu0 %v307
  %407 = vmatprep.subr.mxu0 0.0
  %408 = vmatpush1.msra.mxu0 %v306
  %409 = vmatprep.subr.mxu0 0.0
  %410 = vmatpush1.msra.mxu0 %v305
  %411 = vmatprep.subr.mxu0 0.0
  %412 = vmatpush1.msra.mxu0 %v304
  %413 = vmatprep.subr.mxu0 0.0
  %414 = vmatpush1.msra.mxu0 %v303
  %415 = vmatprep.subr.mxu0 0.0
  %416 = vmatpush1.msra.mxu0 %v302
  %417 = vmatprep.subr.mxu0 0.0
  %418 = vmatpush1.msra.mxu0 %v301
  %419 = vmatprep.subr.mxu0 0.0
  %420 = vmatpush1.msra.mxu0 %v300
  %421 = vmatprep.subr.mxu0 0.0
  %422 = vmatpush1.msra.mxu0 %v299
  %423 = vmatprep.subr.mxu0 0.0
  %424 = vmatpush1.msra.mxu0 %v298
  %425 = vmatprep.subr.mxu0 0.0
  %426 = vmatpush1.msra.mxu0 %v297
  %427 = vmatprep.subr.mxu0 0.0
  %428 = vmatpush1.msra.mxu0 %v296
  %429 = vmatprep.subr.mxu0 0.0
  %430 = vmatpush2.msra.mxu0 0.0
  %431 = vmatprep.subr.mxu0 0.0
  %432 = vmatpush2.msra.mxu0 0.0
  %433 = vmatprep.subr.mxu0 0.0
  %434 = vmatpush2.msra.mxu0 0.0
  %435 = vmatprep.subr.mxu0 0.0
  %436 = vmatpush2.msra.mxu0 0.0
  %437 = vmatprep.subr.mxu0 0.0
  %438 = vmatpush2.msra.mxu0 0.0
  %439 = vmatprep.subr.mxu0 0.0
  %440 = vmatpush2.msra.mxu0 0.0
  %441 = vmatprep.subr.mxu0 0.0
  %442 = vmatpush2.msra.mxu0 0.0
  %443 = vmatprep.subr.mxu0 0.0
  %444 = vmatpush2.msra.mxu0 0.0
  %445 = vmatprep.subr.mxu0 0.0
  %446 = vmatpush2.msra.mxu0 0.0
  %447 = vmatprep.subr.mxu0 0.0
  %448 = vmatpush2.msra.mxu0 0.0
  %449 = vmatprep.subr.mxu0 0.0
  %450 = vmatpush2.msra.mxu0 0.0
  %451 = vmatprep.subr.mxu0 0.0
  %452 = vmatpush2.msra.mxu0 0.0
  %453 = vmatprep.subr.mxu0 0.0
  %454 = vmatpush2.msra.mxu0 0.0
  %455 = vmatprep.subr.mxu0 0.0
  %456 = vmatpush2.msra.mxu0 0.0
  %457 = vmatprep.subr.mxu0 0.0
  %458 = vmatpush2.msra.mxu0 0.0
  %459 = vmatprep.subr.mxu0 0.0
  %460 = vmatpush2.msra.mxu0 0.0
  %461 = vmatprep.mubr.f32.mxu0 0.0
  %462 = vmatmul.mubr.f32.gmra.mxu0 %v246
  %v463 = vpop.f32.mrf.mxu0
  %v464 = vadd.f32 %v379, %v463
  %v465 = vpop.f32.mrf.mxu0
  %466 = vmatprep.mubr.f32.mxu0 0.0
  %467 = vmatmul.mubr.f32.gmra.mxu0 %v251
  %v468 = vpop.f32.mrf.mxu0
  %v469 = vadd.f32 %v384, %v468
  %v470 = vpop.f32.mrf.mxu0
  %471 = vmatprep.mubr.f32.mxu0 0.0
  %472 = vmatmul.mubr.f32.gmra.mxu0 %v256
  %v473 = vpop.f32.mrf.mxu0
  %v474 = vadd.f32 %v389, %v473
  %v475 = vpop.f32.mrf.mxu0
  %476 = vmatprep.mubr.f32.mxu0 0.0
  %477 = vmatmul.mubr.f32.gmra.mxu0 %v261
  %v478 = vpop.f32.mrf.mxu0
  %v479 = vadd.f32 %v394, %v478
  %v480 = vpop.f32.mrf.mxu0
  %481 = vdwg.mxu0
  %v482 = vld [vmem:[%s3] sm:$0x1]
  %v483 = vld [vmem:[%s4] sm:$0x1]
  %vm484 = vcmp.lt.s32.totalorder %v31, 0
  %v485 = vsub.s32 0, %v31
  %v486 = vsel %vm484, %v485, %v31
  %v487 = vshrl.u32 %v486, 4
  %v488 = vand.u32 %v486, 15
  %v489 = vsub.s32 0, %v488
  %v490 = vsel %vm484, %v489, %v488
  %vm491 = vcmp.lt.s32.totalorder %v32, 0
  %v492 = vsub.s32 0, %v32
  %v493 = vsel %vm491, %v492, %v32
  %v494 = vshrl.u32 %v493, 4
  %v495 = vand.u32 %v493, 15
  %v496 = vsub.s32 0, %v495
  %v497 = vsel %vm491, %v496, %v495
  %vm498 = vcmp.lt.s32.totalorder %v33, 0
  %v499 = vsub.s32 0, %v33
  %v500 = vsel %vm498, %v499, %v33
  %v501 = vshrl.u32 %v500, 4
  %v502 = vand.u32 %v500, 15
  %v503 = vsub.s32 0, %v502
  %v504 = vsel %vm498, %v503, %v502
  %vm505 = vcmp.lt.s32.totalorder %v34, 0
  %v506 = vsub.s32 0, %v34
  %v507 = vsel %vm505, %v506, %v34
  %v508 = vshrl.u32 %v507, 4
  %v509 = vand.u32 %v507, 15
  %v510 = vsub.s32 0, %v509
  %v511 = vsel %vm505, %v510, %v509
  %vm512 = vcmp.ne.s32.totalorder %v490, 0
  %vm513 = vcmp.ne.s32.totalorder %v497, 0
  %vm514 = vcmp.ne.s32.totalorder %v504, 0
  %vm515 = vcmp.ne.s32.totalorder %v511, 0
  %vm516 = vcmp.lt.s32.totalorder %v490, 0
  %vm517 = vcmp.lt.s32.totalorder %v497, 0
  %vm518 = vcmp.lt.s32.totalorder %v504, 0
  %vm519 = vcmp.lt.s32.totalorder %v511, 0
  %vm520 = vmand %vm516, %vm512
  %vm521 = vmand %vm517, %vm513
  %vm522 = vmand %vm518, %vm514
  %vm523 = vmand %vm519, %vm515
  %v524 = vadd.s32 %v490, 16
  %v525 = vadd.s32 %v497, 16
  %v526 = vadd.s32 %v504, 16
  %v527 = vadd.s32 %v511, 16
  %v528 = vsel %vm520, %v524, %v490
  %v529 = vsel %vm521, %v525, %v497
  %v530 = vsel %vm522, %v526, %v504
  %v531 = vsel %vm523, %v527, %v511
  %vm532 = vcmp.lt.s32.totalorder %v528, 14
  %vm533 = vcmp.lt.s32.totalorder %v529, 14
  %vm534 = vcmp.lt.s32.totalorder %v530, 14
  %vm535 = vcmp.lt.s32.totalorder %v531, 14
  %vm536 = vcmp.lt.s32.totalorder %v36, 112
  %v537 = vsel %vm532, 1, 0
  %v538 = vsel %vm533, 1, 0
  %v539 = vsel %vm534, 1, 0
  %v540 = vsel %vm535, 1, 0
  %vm541 = vcmp.eq.s32.totalorder %v537, 1
  %vm542 = vcmp.eq.s32.totalorder %v538, 1
  %vm543 = vcmp.eq.s32.totalorder %v539, 1
  %vm544 = vcmp.eq.s32.totalorder %v540, 1
  %v545 = vsel %vm536, 1, 0
  %vm546 = vcmp.eq.s32.totalorder %v545, 1
  %vm547 = vmand %vm541, %vm546
  %vm548 = vmand %vm542, %vm546
  %vm549 = vmand %vm543, %vm546
  %vm550 = vmand %vm544, %vm546
  %v551 = vsel %vm547, 1, 0
  %v552 = vsel %vm548, 1, 0
  %v553 = vsel %vm549, 1, 0
  %v554 = vsel %vm550, 1, 0
  %v555 = vcvt.s32.f32 %v551
  %v556 = vcvt.s32.f32 %v552
  %v557 = vcvt.s32.f32 %v553
  %v558 = vcvt.s32.f32 %v554
  %v559 = vadd.s32 %v31, 32
  %v560 = vadd.s32 %v31, 40
  %v561 = vadd.s32 %v31, 48
  %v562 = vadd.s32 %v31, 56
  %v563 = vadd.s32 %v31, 64
  %v564 = vadd.s32 %v31, 72
  %v565 = vadd.s32 %v31, 80
  %v566 = vadd.s32 %v31, 88
  %v567 = vadd.s32 %v31, 96
  %v568 = vadd.s32 %v31, 104
  %v569 = vadd.s32 %v31, 112
  %v570 = vadd.s32 %v31, 120
  %vm571 = vcmp.lt.s32.totalorder %v31, 0
  %v572 = vsub.s32 0, %v31
  %v573 = vsel %vm571, %v572, %v31
  %v574 = vshrl.u32 %v573, 3
  %v575 = vand.u32 %v573, 7
  %v576 = vsub.s32 0, %v575
  %v577 = vsel %vm571, %v576, %v575
  %vm578 = vcmp.lt.s32.totalorder %v32, 0
  %v579 = vsub.s32 0, %v32
  %v580 = vsel %vm578, %v579, %v32
  %v581 = vshrl.u32 %v580, 3
  %v582 = vand.u32 %v580, 7
  %v583 = vsub.s32 0, %v582
  %v584 = vsel %vm578, %v583, %v582
  %vm585 = vcmp.lt.s32.totalorder %v33, 0
  %v586 = vsub.s32 0, %v33
  %v587 = vsel %vm585, %v586, %v33
  %v588 = vshrl.u32 %v587, 3
  %v589 = vand.u32 %v587, 7
  %v590 = vsub.s32 0, %v589
  %v591 = vsel %vm585, %v590, %v589
  %vm592 = vcmp.lt.s32.totalorder %v34, 0
  %v593 = vsub.s32 0, %v34
  %v594 = vsel %vm592, %v593, %v34
  %v595 = vshrl.u32 %v594, 3
  %v596 = vand.u32 %v594, 7
  %v597 = vsub.s32 0, %v596
  %v598 = vsel %vm592, %v597, %v596
  %vm599 = vcmp.lt.s32.totalorder %v559, 0
  %v600 = vsub.s32 0, %v559
  %v601 = vsel %vm599, %v600, %v559
  %v602 = vshrl.u32 %v601, 3
  %v603 = vand.u32 %v601, 7
  %v604 = vsub.s32 0, %v603
  %v605 = vsel %vm599, %v604, %v603
  %vm606 = vcmp.lt.s32.totalorder %v560, 0
  %v607 = vsub.s32 0, %v560
  %v608 = vsel %vm606, %v607, %v560
  %v609 = vshrl.u32 %v608, 3
  %v610 = vand.u32 %v608, 7
  %v611 = vsub.s32 0, %v610
  %v612 = vsel %vm606, %v611, %v610
  %vm613 = vcmp.lt.s32.totalorder %v561, 0
  %v614 = vsub.s32 0, %v561
  %v615 = vsel %vm613, %v614, %v561
  %v616 = vshrl.u32 %v615, 3
  %v617 = vand.u32 %v615, 7
  %v618 = vsub.s32 0, %v617
  %v619 = vsel %vm613, %v618, %v617
  %vm620 = vcmp.lt.s32.totalorder %v562, 0
  %v621 = vsub.s32 0, %v562
  %v622 = vsel %vm620, %v621, %v562
  %v623 = vshrl.u32 %v622, 3
  %v624 = vand.u32 %v622, 7
  %v625 = vsub.s32 0, %v624
  %v626 = vsel %vm620, %v625, %v624
  %vm627 = vcmp.lt.s32.totalorder %v563, 0
  %v628 = vsub.s32 0, %v563
  %v629 = vsel %vm627, %v628, %v563
  %v630 = vshrl.u32 %v629, 3
  %v631 = vand.u32 %v629, 7
  %v632 = vsub.s32 0, %v631
  %v633 = vsel %vm627, %v632, %v631
  %vm634 = vcmp.lt.s32.totalorder %v564, 0
  %v635 = vsub.s32 0, %v564
  %v636 = vsel %vm634, %v635, %v564
  %v637 = vshrl.u32 %v636, 3
  %v638 = vand.u32 %v636, 7
  %v639 = vsub.s32 0, %v638
  %v640 = vsel %vm634, %v639, %v638
  %vm641 = vcmp.lt.s32.totalorder %v565, 0
  %v642 = vsub.s32 0, %v565
  %v643 = vsel %vm641, %v642, %v565
  %v644 = vshrl.u32 %v643, 3
  %v645 = vand.u32 %v643, 7
  %v646 = vsub.s32 0, %v645
  %v647 = vsel %vm641, %v646, %v645
  %vm648 = vcmp.lt.s32.totalorder %v566, 0
  %v649 = vsub.s32 0, %v566
  %v650 = vsel %vm648, %v649, %v566
  %v651 = vshrl.u32 %v650, 3
  %v652 = vand.u32 %v650, 7
  %v653 = vsub.s32 0, %v652
  %v654 = vsel %vm648, %v653, %v652
  %vm655 = vcmp.lt.s32.totalorder %v567, 0
  %v656 = vsub.s32 0, %v567
  %v657 = vsel %vm655, %v656, %v567
  %v658 = vshrl.u32 %v657, 3
  %v659 = vand.u32 %v657, 7
  %v660 = vsub.s32 0, %v659
  %v661 = vsel %vm655, %v660, %v659
  %vm662 = vcmp.lt.s32.totalorder %v568, 0
  %v663 = vsub.s32 0, %v568
  %v664 = vsel %vm662, %v663, %v568
  %v665 = vshrl.u32 %v664, 3
  %v666 = vand.u32 %v664, 7
  %v667 = vsub.s32 0, %v666
  %v668 = vsel %vm662, %v667, %v666
  %vm669 = vcmp.lt.s32.totalorder %v569, 0
  %v670 = vsub.s32 0, %v569
  %v671 = vsel %vm669, %v670, %v569
  %v672 = vshrl.u32 %v671, 3
  %v673 = vand.u32 %v671, 7
  %v674 = vsub.s32 0, %v673
  %v675 = vsel %vm669, %v674, %v673
  %vm676 = vcmp.lt.s32.totalorder %v570, 0
  %v677 = vsub.s32 0, %v570
  %v678 = vsel %vm676, %v677, %v570
  %v679 = vshrl.u32 %v678, 3
  %v680 = vand.u32 %v678, 7
  %v681 = vsub.s32 0, %v680
  %v682 = vsel %vm676, %v681, %v680
  %vm683 = vcmp.ne.s32.totalorder %v577, 0
  %vm684 = vcmp.ne.s32.totalorder %v584, 0
  %vm685 = vcmp.ne.s32.totalorder %v591, 0
  %vm686 = vcmp.ne.s32.totalorder %v598, 0
  %vm687 = vcmp.ne.s32.totalorder %v605, 0
  %vm688 = vcmp.ne.s32.totalorder %v612, 0
  %vm689 = vcmp.ne.s32.totalorder %v619, 0
  %vm690 = vcmp.ne.s32.totalorder %v626, 0
  %vm691 = vcmp.ne.s32.totalorder %v633, 0
  %vm692 = vcmp.ne.s32.totalorder %v640, 0
  %vm693 = vcmp.ne.s32.totalorder %v647, 0
  %vm694 = vcmp.ne.s32.totalorder %v654, 0
  %vm695 = vcmp.ne.s32.totalorder %v661, 0
  %vm696 = vcmp.ne.s32.totalorder %v668, 0
  %vm697 = vcmp.ne.s32.totalorder %v675, 0
  %vm698 = vcmp.ne.s32.totalorder %v682, 0
  %vm699 = vcmp.lt.s32.totalorder %v577, 0
  %vm700 = vcmp.lt.s32.totalorder %v584, 0
  %vm701 = vcmp.lt.s32.totalorder %v591, 0
  %vm702 = vcmp.lt.s32.totalorder %v598, 0
  %vm703 = vcmp.lt.s32.totalorder %v605, 0
  %vm704 = vcmp.lt.s32.totalorder %v612, 0
  %vm705 = vcmp.lt.s32.totalorder %v619, 0
  %vm706 = vcmp.lt.s32.totalorder %v626, 0
  %vm707 = vcmp.lt.s32.totalorder %v633, 0
  %vm708 = vcmp.lt.s32.totalorder %v640, 0
  %vm709 = vcmp.lt.s32.totalorder %v647, 0
  %vm710 = vcmp.lt.s32.totalorder %v654, 0
  %vm711 = vcmp.lt.s32.totalorder %v661, 0
  %vm712 = vcmp.lt.s32.totalorder %v668, 0
  %vm713 = vcmp.lt.s32.totalorder %v675, 0
  %vm714 = vcmp.lt.s32.totalorder %v682, 0
  %vm715 = vmand %vm699, %vm683
  %vm716 = vmand %vm700, %vm684
  %vm717 = vmand %vm701, %vm685
  %vm718 = vmand %vm702, %vm686
  %vm719 = vmand %vm703, %vm687
  %vm720 = vmand %vm704, %vm688
  %vm721 = vmand %vm705, %vm689
  %vm722 = vmand %vm706, %vm690
  %vm723 = vmand %vm707, %vm691
  %vm724 = vmand %vm708, %vm692
  %vm725 = vmand %vm709, %vm693
  %vm726 = vmand %vm710, %vm694
  %vm727 = vmand %vm711, %vm695
  %vm728 = vmand %vm712, %vm696
  %vm729 = vmand %vm713, %vm697
  %vm730 = vmand %vm714, %vm698
  %v731 = vadd.s32 %v577, 8
  %v732 = vadd.s32 %v584, 8
  %v733 = vadd.s32 %v591, 8
  %v734 = vadd.s32 %v598, 8
  %v735 = vadd.s32 %v605, 8
  %v736 = vadd.s32 %v612, 8
  %v737 = vadd.s32 %v619, 8
  %v738 = vadd.s32 %v626, 8
  %v739 = vadd.s32 %v633, 8
  %v740 = vadd.s32 %v640, 8
  %v741 = vadd.s32 %v647, 8
  %v742 = vadd.s32 %v654, 8
  %v743 = vadd.s32 %v661, 8
  %v744 = vadd.s32 %v668, 8
  %v745 = vadd.s32 %v675, 8
  %v746 = vadd.s32 %v682, 8
  %v747 = vsel %vm715, %v731, %v577
  %v748 = vsel %vm716, %v732, %v584
  %v749 = vsel %vm717, %v733, %v591
  %v750 = vsel %vm718, %v734, %v598
  %v751 = vsel %vm719, %v735, %v605
  %v752 = vsel %vm720, %v736, %v612
  %v753 = vsel %vm721, %v737, %v619
  %v754 = vsel %vm722, %v738, %v626
  %v755 = vsel %vm723, %v739, %v633
  %v756 = vsel %vm724, %v740, %v640
  %v757 = vsel %vm725, %v741, %v647
  %v758 = vsel %vm726, %v742, %v654
  %v759 = vsel %vm727, %v743, %v661
  %v760 = vsel %vm728, %v744, %v668
  %v761 = vsel %vm729, %v745, %v675
  %v762 = vsel %vm730, %v746, %v682
  %vm763 = vcmp.lt.s32.totalorder %v36, 0
  %v764 = vsub.s32 0, %v36
  %v765 = vsel %vm763, %v764, %v36
  %v766 = vshrl.u32 %v765, 3
  %v767 = vand.u32 %v765, 7
  %v768 = vsub.s32 0, %v767
  %v769 = vsel %vm763, %v768, %v767
  %vm770 = vcmp.ne.s32.totalorder %v769, 0
  %vm771 = vcmp.lt.s32.totalorder %v769, 0
  %vm772 = vmand %vm771, %vm770
  %v773 = vadd.s32 %v769, 8
  %v774 = vsel %vm772, %v773, %v769
  %vm775 = vcmp.eq.s32.totalorder %v747, %v774
  %vm776 = vcmp.eq.s32.totalorder %v748, %v774
  %vm777 = vcmp.eq.s32.totalorder %v749, %v774
  %vm778 = vcmp.eq.s32.totalorder %v750, %v774
  %vm779 = vcmp.eq.s32.totalorder %v751, %v774
  %vm780 = vcmp.eq.s32.totalorder %v752, %v774
  %vm781 = vcmp.eq.s32.totalorder %v753, %v774
  %vm782 = vcmp.eq.s32.totalorder %v754, %v774
  %vm783 = vcmp.eq.s32.totalorder %v755, %v774
  %vm784 = vcmp.eq.s32.totalorder %v756, %v774
  %vm785 = vcmp.eq.s32.totalorder %v757, %v774
  %vm786 = vcmp.eq.s32.totalorder %v758, %v774
  %vm787 = vcmp.eq.s32.totalorder %v759, %v774
  %vm788 = vcmp.eq.s32.totalorder %v760, %v774
  %vm789 = vcmp.eq.s32.totalorder %v761, %v774
  %vm790 = vcmp.eq.s32.totalorder %v762, %v774
  %v791 = vsel %vm775, 1, 0
  %v792 = vsel %vm776, 1, 0
  %v793 = vsel %vm777, 1, 0
  %v794 = vsel %vm778, 1, 0
  %v795 = vsel %vm779, 1, 0
  %v796 = vsel %vm780, 1, 0
  %v797 = vsel %vm781, 1, 0
  %v798 = vsel %vm782, 1, 0
  %v799 = vsel %vm783, 1, 0
  %v800 = vsel %vm784, 1, 0
  %v801 = vsel %vm785, 1, 0
  %v802 = vsel %vm786, 1, 0
  %v803 = vsel %vm787, 1, 0
  %v804 = vsel %vm788, 1, 0
  %v805 = vsel %vm789, 1, 0
  %v806 = vsel %vm790, 1, 0
  %v807 = vcvt.s32.f32 %v791
  %v808 = vcvt.s32.f32 %v792
  %v809 = vcvt.s32.f32 %v793
  %v810 = vcvt.s32.f32 %v794
  %v811 = vcvt.s32.f32 %v795
  %v812 = vcvt.s32.f32 %v796
  %v813 = vcvt.s32.f32 %v797
  %v814 = vcvt.s32.f32 %v798
  %v815 = vcvt.s32.f32 %v799
  %v816 = vcvt.s32.f32 %v800
  %v817 = vcvt.s32.f32 %v801
  %v818 = vcvt.s32.f32 %v802
  %v819 = vcvt.s32.f32 %v803
  %v820 = vcvt.s32.f32 %v804
  %v821 = vcvt.s32.f32 %v805
  %v822 = vcvt.s32.f32 %v806
  %v823 = vmul.f32 %v464, %v555
  %v824 = vmul.f32 %v469, %v556
  %v825 = vmul.f32 %v474, %v557
  %v826 = vmul.f32 %v479, %v558
  %827 = vmatprep.subr.mxu0 0.0
  %828 = vmatpush1.msra.mxu0 %v822
  %829 = vmatprep.subr.mxu0 0.0
  %830 = vmatpush1.msra.mxu0 %v821
  %831 = vmatprep.subr.mxu0 0.0
  %832 = vmatpush1.msra.mxu0 %v820
  %833 = vmatprep.subr.mxu0 0.0
  %834 = vmatpush1.msra.mxu0 %v819
  %835 = vmatprep.subr.mxu0 0.0
  %836 = vmatpush1.msra.mxu0 %v818
  %837 = vmatprep.subr.mxu0 0.0
  %838 = vmatpush1.msra.mxu0 %v817
  %839 = vmatprep.subr.mxu0 0.0
  %840 = vmatpush1.msra.mxu0 %v816
  %841 = vmatprep.subr.mxu0 0.0
  %842 = vmatpush1.msra.mxu0 %v815
  %843 = vmatprep.subr.mxu0 0.0
  %844 = vmatpush1.msra.mxu0 %v814
  %845 = vmatprep.subr.mxu0 0.0
  %846 = vmatpush1.msra.mxu0 %v813
  %847 = vmatprep.subr.mxu0 0.0
  %848 = vmatpush1.msra.mxu0 %v812
  %849 = vmatprep.subr.mxu0 0.0
  %850 = vmatpush1.msra.mxu0 %v811
  %851 = vmatprep.subr.mxu0 0.0
  %852 = vmatpush1.msra.mxu0 %v810
  %853 = vmatprep.subr.mxu0 0.0
  %854 = vmatpush1.msra.mxu0 %v809
  %855 = vmatprep.subr.mxu0 0.0
  %856 = vmatpush1.msra.mxu0 %v808
  %857 = vmatprep.subr.mxu0 0.0
  %858 = vmatpush1.msra.mxu0 %v807
  %859 = vmatprep.subr.mxu0 0.0
  %860 = vmatpush2.msra.mxu0 0.0
  %861 = vmatprep.subr.mxu0 0.0
  %862 = vmatpush2.msra.mxu0 0.0
  %863 = vmatprep.subr.mxu0 0.0
  %864 = vmatpush2.msra.mxu0 0.0
  %865 = vmatprep.subr.mxu0 0.0
  %866 = vmatpush2.msra.mxu0 0.0
  %867 = vmatprep.subr.mxu0 0.0
  %868 = vmatpush2.msra.mxu0 0.0
  %869 = vmatprep.subr.mxu0 0.0
  %870 = vmatpush2.msra.mxu0 0.0
  %871 = vmatprep.subr.mxu0 0.0
  %872 = vmatpush2.msra.mxu0 0.0
  %873 = vmatprep.subr.mxu0 0.0
  %874 = vmatpush2.msra.mxu0 0.0
  %875 = vmatprep.subr.mxu0 0.0
  %876 = vmatpush2.msra.mxu0 0.0
  %877 = vmatprep.subr.mxu0 0.0
  %878 = vmatpush2.msra.mxu0 0.0
  %879 = vmatprep.subr.mxu0 0.0
  %880 = vmatpush2.msra.mxu0 0.0
  %881 = vmatprep.subr.mxu0 0.0
  %882 = vmatpush2.msra.mxu0 0.0
  %883 = vmatprep.subr.mxu0 0.0
  %884 = vmatpush2.msra.mxu0 0.0
  %885 = vmatprep.subr.mxu0 0.0
  %886 = vmatpush2.msra.mxu0 0.0
  %887 = vmatprep.subr.mxu0 0.0
  %888 = vmatpush2.msra.mxu0 0.0
  %889 = vmatprep.subr.mxu0 0.0
  %890 = vmatpush2.msra.mxu0 0.0
  %891 = vmatprep.mubr.f32.mxu0 0.0
  %892 = vmatmul.mubr.f32.gmra.mxu0 %v823
  %v893 = vpop.f32.mrf.mxu0
  %v894 = vadd.f32 0.0, %v893
  %v895 = vpop.f32.mrf.mxu0
  %896 = vmatprep.mubr.f32.mxu0 0.0
  %897 = vmatmul.mubr.f32.gmra.mxu0 %v824
  %v898 = vpop.f32.mrf.mxu0
  %v899 = vadd.f32 0.0, %v898
  %v900 = vpop.f32.mrf.mxu0
  %901 = vmatprep.mubr.f32.mxu0 0.0
  %902 = vmatmul.mubr.f32.gmra.mxu0 %v825
  %v903 = vpop.f32.mrf.mxu0
  %v904 = vadd.f32 0.0, %v903
  %v905 = vpop.f32.mrf.mxu0
  %906 = vmatprep.mubr.f32.mxu0 0.0
  %907 = vmatmul.mubr.f32.gmra.mxu0 %v826
  %v908 = vpop.f32.mrf.mxu0
  %v909 = vadd.f32 0.0, %v908
  %v910 = vpop.f32.mrf.mxu0
  %911 = vdwg.mxu0
  %v912 = vadd.f32 %v894, %v899
  %v913 = vadd.f32 %v912, %v904
  %v914 = vadd.f32 %v913, %v909
  %v915 = vrot.slane %v914, 4
  %v916 = vadd.f32 %v914, %v915
  %v917 = vrot.slane %v916, 2
  %v918 = vadd.f32 %v916, %v917
  %v919 = vrot.slane %v918, 1
  %v920 = vadd.f32 %v918, %v919
  %v921 = vmul.f32 %v823, %v464
  %v922 = vmul.f32 %v824, %v469
  %v923 = vmul.f32 %v825, %v474
  %v924 = vmul.f32 %v826, %v479
  %925 = vmatprep.subr.mxu0 0.0
  %926 = vmatpush1.msra.mxu0 %v822
  %927 = vmatprep.subr.mxu0 0.0
  %928 = vmatpush1.msra.mxu0 %v821
  %929 = vmatprep.subr.mxu0 0.0
  %930 = vmatpush1.msra.mxu0 %v820
  %931 = vmatprep.subr.mxu0 0.0
  %932 = vmatpush1.msra.mxu0 %v819
  %933 = vmatprep.subr.mxu0 0.0
  %934 = vmatpush1.msra.mxu0 %v818
  %935 = vmatprep.subr.mxu0 0.0
  %936 = vmatpush1.msra.mxu0 %v817
  %937 = vmatprep.subr.mxu0 0.0
  %938 = vmatpush1.msra.mxu0 %v816
  %939 = vmatprep.subr.mxu0 0.0
  %940 = vmatpush1.msra.mxu0 %v815
  %941 = vmatprep.subr.mxu0 0.0
  %942 = vmatpush1.msra.mxu0 %v814
  %943 = vmatprep.subr.mxu0 0.0
  %944 = vmatpush1.msra.mxu0 %v813
  %945 = vmatprep.subr.mxu0 0.0
  %946 = vmatpush1.msra.mxu0 %v812
  %947 = vmatprep.subr.mxu0 0.0
  %948 = vmatpush1.msra.mxu0 %v811
  %949 = vmatprep.subr.mxu0 0.0
  %950 = vmatpush1.msra.mxu0 %v810
  %951 = vmatprep.subr.mxu0 0.0
  %952 = vmatpush1.msra.mxu0 %v809
  %953 = vmatprep.subr.mxu0 0.0
  %954 = vmatpush1.msra.mxu0 %v808
  %955 = vmatprep.subr.mxu0 0.0
  %956 = vmatpush1.msra.mxu0 %v807
  %957 = vmatprep.subr.mxu0 0.0
  %958 = vmatpush2.msra.mxu0 0.0
  %959 = vmatprep.subr.mxu0 0.0
  %960 = vmatpush2.msra.mxu0 0.0
  %961 = vmatprep.subr.mxu0 0.0
  %962 = vmatpush2.msra.mxu0 0.0
  %963 = vmatprep.subr.mxu0 0.0
  %964 = vmatpush2.msra.mxu0 0.0
  %965 = vmatprep.subr.mxu0 0.0
  %966 = vmatpush2.msra.mxu0 0.0
  %967 = vmatprep.subr.mxu0 0.0
  %968 = vmatpush2.msra.mxu0 0.0
  %969 = vmatprep.subr.mxu0 0.0
  %970 = vmatpush2.msra.mxu0 0.0
  %971 = vmatprep.subr.mxu0 0.0
  %972 = vmatpush2.msra.mxu0 0.0
  %973 = vmatprep.subr.mxu0 0.0
  %974 = vmatpush2.msra.mxu0 0.0
  %975 = vmatprep.subr.mxu0 0.0
  %976 = vmatpush2.msra.mxu0 0.0
  %977 = vmatprep.subr.mxu0 0.0
  %978 = vmatpush2.msra.mxu0 0.0
  %979 = vmatprep.subr.mxu0 0.0
  %980 = vmatpush2.msra.mxu0 0.0
  %981 = vmatprep.subr.mxu0 0.0
  %982 = vmatpush2.msra.mxu0 0.0
  %983 = vmatprep.subr.mxu0 0.0
  %984 = vmatpush2.msra.mxu0 0.0
  %985 = vmatprep.subr.mxu0 0.0
  %986 = vmatpush2.msra.mxu0 0.0
  %987 = vmatprep.subr.mxu0 0.0
  %988 = vmatpush2.msra.mxu0 0.0
  %989 = vmatprep.mubr.f32.mxu0 0.0
  %990 = vmatmul.mubr.f32.gmra.mxu0 %v921
  %v991 = vpop.f32.mrf.mxu0
  %v992 = vadd.f32 0.0, %v991
  %v993 = vpop.f32.mrf.mxu0
  %994 = vmatprep.mubr.f32.mxu0 0.0
  %995 = vmatmul.mubr.f32.gmra.mxu0 %v922
  %v996 = vpop.f32.mrf.mxu0
  %v997 = vadd.f32 0.0, %v996
  %v998 = vpop.f32.mrf.mxu0
  %999 = vmatprep.mubr.f32.mxu0 0.0
  %1000 = vmatmul.mubr.f32.gmra.mxu0 %v923
  %v1001 = vpop.f32.mrf.mxu0
  %v1002 = vadd.f32 0.0, %v1001
  %v1003 = vpop.f32.mrf.mxu0
  %1004 = vmatprep.mubr.f32.mxu0 0.0
  %1005 = vmatmul.mubr.f32.gmra.mxu0 %v924
  %v1006 = vpop.f32.mrf.mxu0
  %v1007 = vadd.f32 0.0, %v1006
  %v1008 = vpop.f32.mrf.mxu0
  %1009 = vdwg.mxu0
  %v1010 = vadd.f32 %v992, %v997
  %v1011 = vadd.f32 %v1010, %v1002
  %v1012 = vadd.f32 %v1011, %v1007
  %v1013 = vrot.slane %v1012, 4
  %v1014 = vadd.f32 %v1012, %v1013
  %v1015 = vrot.slane %v1014, 2
  %v1016 = vadd.f32 %v1014, %v1015
  %v1017 = vrot.slane %v1016, 1
  %v1018 = vadd.f32 %v1016, %v1017
  %v1019 = vmul.f32 %v920, 0.0025510204
  %v1020 = vmul.f32 %v1018, 0.0025510204
  %v1021 = vmul.f32 %v1019, %v1019
  %v1022 = vsub.f32 %v1020, %v1021
  %v1023 = vmax.f32 %v1022, 0.0
  %v1024 = vadd.f32 %v1023, 1e-05
  %v1025 = vrsqrt.pop %v1024
  %v1026 = vmul.f32 %v482, %v1025
  %v1027 = vmul.f32 %v1019, %v1026
  %v1028 = vsub.f32 %v483, %v1027
  %v1030 = vlaneseq
  %v1031 = vshrl.u32 %v1030, 7
  %v1032 = vsub.s32 0, %v1031
  %v1033 = vrot.slane %v1026, %v1032
  %v1035 = vmul.f32 %v464, %v1033
  %v1036 = vmul.f32 %v469, %v1033
  %v1037 = vmul.f32 %v474, %v1033
  %v1038 = vmul.f32 %v479, %v1033
  %v1040 = vlaneseq
  %v1041 = vshrl.u32 %v1040, 7
  %v1042 = vsub.s32 0, %v1041
  %v1043 = vrot.slane %v1028, %v1042
  %v1045 = vadd.f32 %v1035, %v1043
  %v1046 = vadd.f32 %v1036, %v1043
  %v1047 = vadd.f32 %v1037, %v1043
  %v1048 = vadd.f32 %v1038, %v1043
  %v1049 = vmax.f32 %v1045, 0.0
  %v1050 = vmax.f32 %v1046, 0.0
  %v1051 = vmax.f32 %v1047, 0.0
  %v1052 = vmax.f32 %v1048, 0.0
  %1053 = vmatprep.subr.mxu0 0.0
  %1054 = vmatpush1.msra.mxu0 0.0
  %1055 = vmatprep.subr.mxu0 0.0
  %1056 = vmatpush1.msra.mxu0 0.0
  %1057 = vmatprep.subr.mxu0 0.0
  %1058 = vmatpush1.msra.mxu0 0.0
  %1059 = vmatprep.subr.mxu0 0.0
  %1060 = vmatpush1.msra.mxu0 0.0
  %1061 = vmatprep.subr.mxu0 0.0
  %1062 = vmatpush1.msra.mxu0 0.0
  %1063 = vmatprep.subr.mxu0 0.0
  %1064 = vmatpush1.msra.mxu0 0.0
  %1065 = vmatprep.subr.mxu0 0.0
  %1066 = vmatpush1.msra.mxu0 0.0
  %1067 = vmatprep.subr.mxu0 0.0
  %1068 = vmatpush1.msra.mxu0 0.0
  %1069 = vmatprep.subr.mxu0 0.0
  %1070 = vmatpush1.msra.mxu0 0.0
  %1071 = vmatprep.subr.mxu0 0.0
  %1072 = vmatpush1.msra.mxu0 0.0
  %1073 = vmatprep.subr.mxu0 0.0
  %1074 = vmatpush1.msra.mxu0 0.0
  %1075 = vmatprep.subr.mxu0 0.0
  %1076 = vmatpush1.msra.mxu0 0.0
  %1077 = vmatprep.subr.mxu0 0.0
  %1078 = vmatpush1.msra.mxu0 %v1052
  %1079 = vmatprep.subr.mxu0 0.0
  %1080 = vmatpush1.msra.mxu0 %v1051
  %1081 = vmatprep.subr.mxu0 0.0
  %1082 = vmatpush1.msra.mxu0 %v1050
  %1083 = vmatprep.subr.mxu0 0.0
  %1084 = vmatpush1.msra.mxu0 %v1049
  %1085 = vmatprep.subr.mxu0 0.0
  %1086 = vmatpush2.msra.mxu0 0.0
  %1087 = vmatprep.subr.mxu0 0.0
  %1088 = vmatpush2.msra.mxu0 0.0
  %1089 = vmatprep.subr.mxu0 0.0
  %1090 = vmatpush2.msra.mxu0 0.0
  %1091 = vmatprep.subr.mxu0 0.0
  %1092 = vmatpush2.msra.mxu0 0.0
  %1093 = vmatprep.subr.mxu0 0.0
  %1094 = vmatpush2.msra.mxu0 0.0
  %1095 = vmatprep.subr.mxu0 0.0
  %1096 = vmatpush2.msra.mxu0 0.0
  %1097 = vmatprep.subr.mxu0 0.0
  %1098 = vmatpush2.msra.mxu0 0.0
  %1099 = vmatprep.subr.mxu0 0.0
  %1100 = vmatpush2.msra.mxu0 0.0
  %1101 = vmatprep.subr.mxu0 0.0
  %1102 = vmatpush2.msra.mxu0 0.0
  %1103 = vmatprep.subr.mxu0 0.0
  %1104 = vmatpush2.msra.mxu0 0.0
  %1105 = vmatprep.subr.mxu0 0.0
  %1106 = vmatpush2.msra.mxu0 0.0
  %1107 = vmatprep.subr.mxu0 0.0
  %1108 = vmatpush2.msra.mxu0 0.0
  %1109 = vmatprep.subr.mxu0 0.0
  %1110 = vmatpush2.msra.mxu0 0.0
  %1111 = vmatprep.subr.mxu0 0.0
  %1112 = vmatpush2.msra.mxu0 0.0
  %1113 = vmatprep.subr.mxu0 0.0
  %1114 = vmatpush2.msra.mxu0 0.0
  %1115 = vmatprep.subr.mxu0 0.0
  %1116 = vmatpush2.msra.mxu0 0.0
  %1117 = vmatprep.mubr.f32.mxu0 0.0
  %1118 = vmatmul.mubr.f32.gmra.mxu0 %v55
  %v1119 = vpop.f32.mrf.mxu0
  %v1120 = vadd.f32 0.0, %v1119
  %v1121 = vpop.f32.mrf.mxu0
  %1122 = vmatprep.mubr.f32.mxu0 0.0
  %1123 = vmatmul.mubr.f32.gmra.mxu0 %v58
  %v1124 = vpop.f32.mrf.mxu0
  %v1125 = vadd.f32 0.0, %v1124
  %v1126 = vpop.f32.mrf.mxu0
  %1127 = vmatprep.mubr.f32.mxu0 0.0
  %1128 = vmatmul.mubr.f32.gmra.mxu0 %v61
  %v1129 = vpop.f32.mrf.mxu0
  %v1130 = vadd.f32 0.0, %v1129
  %v1131 = vpop.f32.mrf.mxu0
  %1132 = vmatprep.mubr.f32.mxu0 0.0
  %1133 = vmatmul.mubr.f32.gmra.mxu0 %v64
  %v1134 = vpop.f32.mrf.mxu0
  %v1135 = vadd.f32 0.0, %v1134
  %v1136 = vpop.f32.mrf.mxu0
  %1137 = vdwg.mxu0
  %1138 = vmatprep.subr.mxu0 0.0
  %1139 = vmatpush1.msra.mxu0 0.0
  %1140 = vmatprep.subr.mxu0 0.0
  %1141 = vmatpush1.msra.mxu0 0.0
  %1142 = vmatprep.subr.mxu0 0.0
  %1143 = vmatpush1.msra.mxu0 0.0
  %1144 = vmatprep.subr.mxu0 0.0
  %1145 = vmatpush1.msra.mxu0 0.0
  %1146 = vmatprep.subr.mxu0 0.0
  %1147 = vmatpush1.msra.mxu0 0.0
  %1148 = vmatprep.subr.mxu0 0.0
  %1149 = vmatpush1.msra.mxu0 0.0
  %1150 = vmatprep.subr.mxu0 0.0
  %1151 = vmatpush1.msra.mxu0 0.0
  %1152 = vmatprep.subr.mxu0 0.0
  %1153 = vmatpush1.msra.mxu0 0.0
  %1154 = vmatprep.subr.mxu0 0.0
  %1155 = vmatpush1.msra.mxu0 0.0
  %1156 = vmatprep.subr.mxu0 0.0
  %1157 = vmatpush1.msra.mxu0 0.0
  %1158 = vmatprep.subr.mxu0 0.0
  %1159 = vmatpush1.msra.mxu0 0.0
  %1160 = vmatprep.subr.mxu0 0.0
  %1161 = vmatpush1.msra.mxu0 0.0
  %1162 = vmatprep.subr.mxu0 0.0
  %1163 = vmatpush1.msra.mxu0 %v1052
  %1164 = vmatprep.subr.mxu0 0.0
  %1165 = vmatpush1.msra.mxu0 %v1051
  %1166 = vmatprep.subr.mxu0 0.0
  %1167 = vmatpush1.msra.mxu0 %v1050
  %1168 = vmatprep.subr.mxu0 0.0
  %1169 = vmatpush1.msra.mxu0 %v1049
  %1170 = vmatprep.subr.mxu0 0.0
  %1171 = vmatpush2.msra.mxu0 0.0
  %1172 = vmatprep.subr.mxu0 0.0
  %1173 = vmatpush2.msra.mxu0 0.0
  %1174 = vmatprep.subr.mxu0 0.0
  %1175 = vmatpush2.msra.mxu0 0.0
  %1176 = vmatprep.subr.mxu0 0.0
  %1177 = vmatpush2.msra.mxu0 0.0
  %1178 = vmatprep.subr.mxu0 0.0
  %1179 = vmatpush2.msra.mxu0 0.0
  %1180 = vmatprep.subr.mxu0 0.0
  %1181 = vmatpush2.msra.mxu0 0.0
  %1182 = vmatprep.subr.mxu0 0.0
  %1183 = vmatpush2.msra.mxu0 0.0
  %1184 = vmatprep.subr.mxu0 0.0
  %1185 = vmatpush2.msra.mxu0 0.0
  %1186 = vmatprep.subr.mxu0 0.0
  %1187 = vmatpush2.msra.mxu0 0.0
  %1188 = vmatprep.subr.mxu0 0.0
  %1189 = vmatpush2.msra.mxu0 0.0
  %1190 = vmatprep.subr.mxu0 0.0
  %1191 = vmatpush2.msra.mxu0 0.0
  %1192 = vmatprep.subr.mxu0 0.0
  %1193 = vmatpush2.msra.mxu0 0.0
  %1194 = vmatprep.subr.mxu0 0.0
  %1195 = vmatpush2.msra.mxu0 0.0
  %1196 = vmatprep.subr.mxu0 0.0
  %1197 = vmatpush2.msra.mxu0 0.0
  %1198 = vmatprep.subr.mxu0 0.0
  %1199 = vmatpush2.msra.mxu0 0.0
  %1200 = vmatprep.subr.mxu0 0.0
  %1201 = vmatpush2.msra.mxu0 0.0
  %1202 = vmatprep.mubr.f32.mxu0 0.0
  %1203 = vmatmul.mubr.f32.gmra.mxu0 %v168
  %v1204 = vpop.f32.mrf.mxu0
  %v1205 = vadd.f32 0.0, %v1204
  %v1206 = vpop.f32.mrf.mxu0
  %1207 = vmatprep.mubr.f32.mxu0 0.0
  %1208 = vmatmul.mubr.f32.gmra.mxu0 %v171
  %v1209 = vpop.f32.mrf.mxu0
  %v1210 = vadd.f32 0.0, %v1209
  %v1211 = vpop.f32.mrf.mxu0
  %1212 = vmatprep.mubr.f32.mxu0 0.0
  %1213 = vmatmul.mubr.f32.gmra.mxu0 %v174
  %v1214 = vpop.f32.mrf.mxu0
  %v1215 = vadd.f32 0.0, %v1214
  %v1216 = vpop.f32.mrf.mxu0
  %1217 = vmatprep.mubr.f32.mxu0 0.0
  %1218 = vmatmul.mubr.f32.gmra.mxu0 %v177
  %v1219 = vpop.f32.mrf.mxu0
  %v1220 = vadd.f32 0.0, %v1219
  %v1221 = vpop.f32.mrf.mxu0
  %1222 = vdwg.mxu0
  %v1223 = vld [vmem:[%s2] sm:$0xff]
  %v1224 = vld [vmem:[%s2 + $0x8] sm:$0xff]
  %v1225 = vld [vmem:[%s2 + $0x10] sm:$0xff]
  %v1226 = vld [vmem:[%s2 + $0x18] sm:$0xff]
  %v1227 = vld [vmem:[%s2 + $0x20] sm:$0xff]
  %v1228 = vld [vmem:[%s2 + $0x28] sm:$0xff]
  %v1229 = vld [vmem:[%s2 + $0x30] sm:$0xff]
  %v1230 = vld [vmem:[%s2 + $0x38] sm:$0xff]
  %v1231 = vld [vmem:[%s2 + $0x40] sm:$0xff]
  %v1232 = vld [vmem:[%s2 + $0x48] sm:$0xff]
  %v1233 = vld [vmem:[%s2 + $0x50] sm:$0xff]
  %v1234 = vld [vmem:[%s2 + $0x58] sm:$0xff]
  %v1235 = vld [vmem:[%s2 + $0x60] sm:$0xff]
  %v1236 = vld [vmem:[%s2 + $0x68] sm:$0xff]
  %v1237 = vld [vmem:[%s2 + $0x70] sm:$0xff]
  %v1238 = vld [vmem:[%s2 + $0x78] sm:$0xff]
  %v1239 = vld [vmem:[%s2 + $0x80] sm:$0xff]
  %v1240 = vld [vmem:[%s2 + $0x88] sm:$0xff]
  %v1241 = vld [vmem:[%s2 + $0x90] sm:$0xff]
  %v1242 = vld [vmem:[%s2 + $0x98] sm:$0xff]
  %v1243 = vld [vmem:[%s2 + $0xa0] sm:$0xff]
  %v1244 = vld [vmem:[%s2 + $0xa8] sm:$0xff]
  %v1245 = vld [vmem:[%s2 + $0xb0] sm:$0xff]
  %v1246 = vld [vmem:[%s2 + $0xb8] sm:$0xff]
  %v1247 = vld [vmem:[%s2 + $0xc0] sm:$0xff]
  %v1248 = vld [vmem:[%s2 + $0xc8] sm:$0xff]
  %v1249 = vld [vmem:[%s2 + $0xd0] sm:$0xff]
  %v1250 = vld [vmem:[%s2 + $0xd8] sm:$0xff]
  %v1251 = vld [vmem:[%s2 + $0xe0] sm:$0xff]
  %v1252 = vld [vmem:[%s2 + $0xe8] sm:$0xff]
  %v1253 = vld [vmem:[%s2 + $0xf0] sm:$0xff]
  %v1254 = vld [vmem:[%s2 + $0xf8] sm:$0xff]
  %v1255 = vld [vmem:[%s2 + $0x100] sm:$0xff]
  %v1256 = vld [vmem:[%s2 + $0x108] sm:$0xff]
  %v1257 = vld [vmem:[%s2 + $0x110] sm:$0xff]
  %v1258 = vld [vmem:[%s2 + $0x118] sm:$0xff]
  %v1259 = vld [vmem:[%s2 + $0x120] sm:$0xff]
  %v1260 = vld [vmem:[%s2 + $0x128] sm:$0xff]
  %v1261 = vld [vmem:[%s2 + $0x130] sm:$0xff]
  %v1262 = vld [vmem:[%s2 + $0x138] sm:$0xff]
  %v1263 = vld [vmem:[%s2 + $0x140] sm:$0xff]
  %v1264 = vld [vmem:[%s2 + $0x148] sm:$0xff]
  %v1265 = vld [vmem:[%s2 + $0x150] sm:$0xff]
  %v1266 = vld [vmem:[%s2 + $0x158] sm:$0xff]
  %v1267 = vld [vmem:[%s2 + $0x160] sm:$0xff]
  %v1268 = vld [vmem:[%s2 + $0x168] sm:$0xff]
  %v1269 = vld [vmem:[%s2 + $0x170] sm:$0xff]
  %v1270 = vld [vmem:[%s2 + $0x178] sm:$0xff]
  %1271 = vmatprep.subr.mxu0 0.0
  %1272 = vmatpush1.msra.mxu0 %v1238
  %1273 = vmatprep.subr.mxu0 0.0
  %1274 = vmatpush1.msra.mxu0 %v1237
  %1275 = vmatprep.subr.mxu0 0.0
  %1276 = vmatpush1.msra.mxu0 %v1236
  %1277 = vmatprep.subr.mxu0 0.0
  %1278 = vmatpush1.msra.mxu0 %v1235
  %1279 = vmatprep.subr.mxu0 0.0
  %1280 = vmatpush1.msra.mxu0 %v1234
  %1281 = vmatprep.subr.mxu0 0.0
  %1282 = vmatpush1.msra.mxu0 %v1233
  %1283 = vmatprep.subr.mxu0 0.0
  %1284 = vmatpush1.msra.mxu0 %v1232
  %1285 = vmatprep.subr.mxu0 0.0
  %1286 = vmatpush1.msra.mxu0 %v1231
  %1287 = vmatprep.subr.mxu0 0.0
  %1288 = vmatpush1.msra.mxu0 %v1230
  %1289 = vmatprep.subr.mxu0 0.0
  %1290 = vmatpush1.msra.mxu0 %v1229
  %1291 = vmatprep.subr.mxu0 0.0
  %1292 = vmatpush1.msra.mxu0 %v1228
  %1293 = vmatprep.subr.mxu0 0.0
  %1294 = vmatpush1.msra.mxu0 %v1227
  %1295 = vmatprep.subr.mxu0 0.0
  %1296 = vmatpush1.msra.mxu0 %v1226
  %1297 = vmatprep.subr.mxu0 0.0
  %1298 = vmatpush1.msra.mxu0 %v1225
  %1299 = vmatprep.subr.mxu0 0.0
  %1300 = vmatpush1.msra.mxu0 %v1224
  %1301 = vmatprep.subr.mxu0 0.0
  %1302 = vmatpush1.msra.mxu0 %v1223
  %1303 = vmatprep.subr.mxu0 0.0
  %1304 = vmatpush2.msra.mxu0 %v1254
  %1305 = vmatprep.subr.mxu0 0.0
  %1306 = vmatpush2.msra.mxu0 %v1253
  %1307 = vmatprep.subr.mxu0 0.0
  %1308 = vmatpush2.msra.mxu0 %v1252
  %1309 = vmatprep.subr.mxu0 0.0
  %1310 = vmatpush2.msra.mxu0 %v1251
  %1311 = vmatprep.subr.mxu0 0.0
  %1312 = vmatpush2.msra.mxu0 %v1250
  %1313 = vmatprep.subr.mxu0 0.0
  %1314 = vmatpush2.msra.mxu0 %v1249
  %1315 = vmatprep.subr.mxu0 0.0
  %1316 = vmatpush2.msra.mxu0 %v1248
  %1317 = vmatprep.subr.mxu0 0.0
  %1318 = vmatpush2.msra.mxu0 %v1247
  %1319 = vmatprep.subr.mxu0 0.0
  %1320 = vmatpush2.msra.mxu0 %v1246
  %1321 = vmatprep.subr.mxu0 0.0
  %1322 = vmatpush2.msra.mxu0 %v1245
  %1323 = vmatprep.subr.mxu0 0.0
  %1324 = vmatpush2.msra.mxu0 %v1244
  %1325 = vmatprep.subr.mxu0 0.0
  %1326 = vmatpush2.msra.mxu0 %v1243
  %1327 = vmatprep.subr.mxu0 0.0
  %1328 = vmatpush2.msra.mxu0 %v1242
  %1329 = vmatprep.subr.mxu0 0.0
  %1330 = vmatpush2.msra.mxu0 %v1241
  %1331 = vmatprep.subr.mxu0 0.0
  %1332 = vmatpush2.msra.mxu0 %v1240
  %1333 = vmatprep.subr.mxu0 0.0
  %1334 = vmatpush2.msra.mxu0 %v1239
  %1335 = vmatprep.mubr.f32.mxu0 %v1120
  %1336 = vmatmul.mubr.f32.gmra.mxu0 %v1049
  %v1337 = vpop.f32.mrf.mxu0
  %v1338 = vadd.f32 0.0, %v1337
  %v1339 = vpop.f32.mrf.mxu0
  %1340 = vmatprep.mubr.f32.mxu0 %v1125
  %1341 = vmatmul.mubr.f32.gmra.mxu0 %v1050
  %v1342 = vpop.f32.mrf.mxu0
  %v1343 = vadd.f32 0.0, %v1342
  %v1344 = vpop.f32.mrf.mxu0
  %1345 = vmatprep.mubr.f32.mxu0 %v1130
  %1346 = vmatmul.mubr.f32.gmra.mxu0 %v1051
  %v1347 = vpop.f32.mrf.mxu0
  %v1348 = vadd.f32 0.0, %v1347
  %v1349 = vpop.f32.mrf.mxu0
  %1350 = vmatprep.mubr.f32.mxu0 %v1135
  %1351 = vmatmul.mubr.f32.gmra.mxu0 %v1052
  %v1352 = vpop.f32.mrf.mxu0
  %v1353 = vadd.f32 0.0, %v1352
  %v1354 = vpop.f32.mrf.mxu0
  %1355 = vdwg.mxu0
  %1356 = vmatprep.subr.mxu0 0.0
  %1357 = vmatpush1.msra.mxu0 %v1270
  %1358 = vmatprep.subr.mxu0 0.0
  %1359 = vmatpush1.msra.mxu0 %v1269
  %1360 = vmatprep.subr.mxu0 0.0
  %1361 = vmatpush1.msra.mxu0 %v1268
  %1362 = vmatprep.subr.mxu0 0.0
  %1363 = vmatpush1.msra.mxu0 %v1267
  %1364 = vmatprep.subr.mxu0 0.0
  %1365 = vmatpush1.msra.mxu0 %v1266
  %1366 = vmatprep.subr.mxu0 0.0
  %1367 = vmatpush1.msra.mxu0 %v1265
  %1368 = vmatprep.subr.mxu0 0.0
  %1369 = vmatpush1.msra.mxu0 %v1264
  %1370 = vmatprep.subr.mxu0 0.0
  %1371 = vmatpush1.msra.mxu0 %v1263
  %1372 = vmatprep.subr.mxu0 0.0
  %1373 = vmatpush1.msra.mxu0 %v1262
  %1374 = vmatprep.subr.mxu0 0.0
  %1375 = vmatpush1.msra.mxu0 %v1261
  %1376 = vmatprep.subr.mxu0 0.0
  %1377 = vmatpush1.msra.mxu0 %v1260
  %1378 = vmatprep.subr.mxu0 0.0
  %1379 = vmatpush1.msra.mxu0 %v1259
  %1380 = vmatprep.subr.mxu0 0.0
  %1381 = vmatpush1.msra.mxu0 %v1258
  %1382 = vmatprep.subr.mxu0 0.0
  %1383 = vmatpush1.msra.mxu0 %v1257
  %1384 = vmatprep.subr.mxu0 0.0
  %1385 = vmatpush1.msra.mxu0 %v1256
  %1386 = vmatprep.subr.mxu0 0.0
  %1387 = vmatpush1.msra.mxu0 %v1255
  %1388 = vmatprep.subr.mxu0 0.0
  %1389 = vmatpush2.msra.mxu0 0.0
  %1390 = vmatprep.subr.mxu0 0.0
  %1391 = vmatpush2.msra.mxu0 0.0
  %1392 = vmatprep.subr.mxu0 0.0
  %1393 = vmatpush2.msra.mxu0 0.0
  %1394 = vmatprep.subr.mxu0 0.0
  %1395 = vmatpush2.msra.mxu0 0.0
  %1396 = vmatprep.subr.mxu0 0.0
  %1397 = vmatpush2.msra.mxu0 0.0
  %1398 = vmatprep.subr.mxu0 0.0
  %1399 = vmatpush2.msra.mxu0 0.0
  %1400 = vmatprep.subr.mxu0 0.0
  %1401 = vmatpush2.msra.mxu0 0.0
  %1402 = vmatprep.subr.mxu0 0.0
  %1403 = vmatpush2.msra.mxu0 0.0
  %1404 = vmatprep.subr.mxu0 0.0
  %1405 = vmatpush2.msra.mxu0 0.0
  %1406 = vmatprep.subr.mxu0 0.0
  %1407 = vmatpush2.msra.mxu0 0.0
  %1408 = vmatprep.subr.mxu0 0.0
  %1409 = vmatpush2.msra.mxu0 0.0
  %1410 = vmatprep.subr.mxu0 0.0
  %1411 = vmatpush2.msra.mxu0 0.0
  %1412 = vmatprep.subr.mxu0 0.0
  %1413 = vmatpush2.msra.mxu0 0.0
  %1414 = vmatprep.subr.mxu0 0.0
  %1415 = vmatpush2.msra.mxu0 0.0
  %1416 = vmatprep.subr.mxu0 0.0
  %1417 = vmatpush2.msra.mxu0 0.0
  %1418 = vmatprep.subr.mxu0 0.0
  %1419 = vmatpush2.msra.mxu0 0.0
  %1420 = vmatprep.mubr.f32.mxu0 0.0
  %1421 = vmatmul.mubr.f32.gmra.mxu0 %v1205
  %v1422 = vpop.f32.mrf.mxu0
  %v1423 = vadd.f32 %v1338, %v1422
  %v1424 = vpop.f32.mrf.mxu0
  %1425 = vmatprep.mubr.f32.mxu0 0.0
  %1426 = vmatmul.mubr.f32.gmra.mxu0 %v1210
  %v1427 = vpop.f32.mrf.mxu0
  %v1428 = vadd.f32 %v1343, %v1427
  %v1429 = vpop.f32.mrf.mxu0
  %1430 = vmatprep.mubr.f32.mxu0 0.0
  %1431 = vmatmul.mubr.f32.gmra.mxu0 %v1215
  %v1432 = vpop.f32.mrf.mxu0
  %v1433 = vadd.f32 %v1348, %v1432
  %v1434 = vpop.f32.mrf.mxu0
  %1435 = vmatprep.mubr.f32.mxu0 0.0
  %1436 = vmatmul.mubr.f32.gmra.mxu0 %v1220
  %v1437 = vpop.f32.mrf.mxu0
  %v1438 = vadd.f32 %v1353, %v1437
  %v1439 = vpop.f32.mrf.mxu0
  %1440 = vdwg.mxu0
  %v1441 = vld [vmem:[%s5] sm:$0x1]
  %v1442 = vld [vmem:[%s6] sm:$0x1]
  %vm1443 = vcmp.lt.s32.totalorder %v528, 12
  %vm1444 = vcmp.lt.s32.totalorder %v529, 12
  %vm1445 = vcmp.lt.s32.totalorder %v530, 12
  %vm1446 = vcmp.lt.s32.totalorder %v531, 12
  %vm1447 = vcmp.lt.s32.totalorder %v36, 96
  %v1448 = vsel %vm1443, 1, 0
  %v1449 = vsel %vm1444, 1, 0
  %v1450 = vsel %vm1445, 1, 0
  %v1451 = vsel %vm1446, 1, 0
  %vm1452 = vcmp.eq.s32.totalorder %v1448, 1
  %vm1453 = vcmp.eq.s32.totalorder %v1449, 1
  %vm1454 = vcmp.eq.s32.totalorder %v1450, 1
  %vm1455 = vcmp.eq.s32.totalorder %v1451, 1
  %v1456 = vsel %vm1447, 1, 0
  %vm1457 = vcmp.eq.s32.totalorder %v1456, 1
  %vm1458 = vmand %vm1452, %vm1457
  %vm1459 = vmand %vm1453, %vm1457
  %vm1460 = vmand %vm1454, %vm1457
  %vm1461 = vmand %vm1455, %vm1457
  %v1462 = vsel %vm1458, 1, 0
  %v1463 = vsel %vm1459, 1, 0
  %v1464 = vsel %vm1460, 1, 0
  %v1465 = vsel %vm1461, 1, 0
  %v1466 = vcvt.s32.f32 %v1462
  %v1467 = vcvt.s32.f32 %v1463
  %v1468 = vcvt.s32.f32 %v1464
  %v1469 = vcvt.s32.f32 %v1465
  %v1470 = vmul.f32 %v1423, %v1466
  %v1471 = vmul.f32 %v1428, %v1467
  %v1472 = vmul.f32 %v1433, %v1468
  %v1473 = vmul.f32 %v1438, %v1469
  %1474 = vmatprep.subr.mxu0 0.0
  %1475 = vmatpush1.msra.mxu0 %v822
  %1476 = vmatprep.subr.mxu0 0.0
  %1477 = vmatpush1.msra.mxu0 %v821
  %1478 = vmatprep.subr.mxu0 0.0
  %1479 = vmatpush1.msra.mxu0 %v820
  %1480 = vmatprep.subr.mxu0 0.0
  %1481 = vmatpush1.msra.mxu0 %v819
  %1482 = vmatprep.subr.mxu0 0.0
  %1483 = vmatpush1.msra.mxu0 %v818
  %1484 = vmatprep.subr.mxu0 0.0
  %1485 = vmatpush1.msra.mxu0 %v817
  %1486 = vmatprep.subr.mxu0 0.0
  %1487 = vmatpush1.msra.mxu0 %v816
  %1488 = vmatprep.subr.mxu0 0.0
  %1489 = vmatpush1.msra.mxu0 %v815
  %1490 = vmatprep.subr.mxu0 0.0
  %1491 = vmatpush1.msra.mxu0 %v814
  %1492 = vmatprep.subr.mxu0 0.0
  %1493 = vmatpush1.msra.mxu0 %v813
  %1494 = vmatprep.subr.mxu0 0.0
  %1495 = vmatpush1.msra.mxu0 %v812
  %1496 = vmatprep.subr.mxu0 0.0
  %1497 = vmatpush1.msra.mxu0 %v811
  %1498 = vmatprep.subr.mxu0 0.0
  %1499 = vmatpush1.msra.mxu0 %v810
  %1500 = vmatprep.subr.mxu0 0.0
  %1501 = vmatpush1.msra.mxu0 %v809
  %1502 = vmatprep.subr.mxu0 0.0
  %1503 = vmatpush1.msra.mxu0 %v808
  %1504 = vmatprep.subr.mxu0 0.0
  %1505 = vmatpush1.msra.mxu0 %v807
  %1506 = vmatprep.subr.mxu0 0.0
  %1507 = vmatpush2.msra.mxu0 0.0
  %1508 = vmatprep.subr.mxu0 0.0
  %1509 = vmatpush2.msra.mxu0 0.0
  %1510 = vmatprep.subr.mxu0 0.0
  %1511 = vmatpush2.msra.mxu0 0.0
  %1512 = vmatprep.subr.mxu0 0.0
  %1513 = vmatpush2.msra.mxu0 0.0
  %1514 = vmatprep.subr.mxu0 0.0
  %1515 = vmatpush2.msra.mxu0 0.0
  %1516 = vmatprep.subr.mxu0 0.0
  %1517 = vmatpush2.msra.mxu0 0.0
  %1518 = vmatprep.subr.mxu0 0.0
  %1519 = vmatpush2.msra.mxu0 0.0
  %1520 = vmatprep.subr.mxu0 0.0
  %1521 = vmatpush2.msra.mxu0 0.0
  %1522 = vmatprep.subr.mxu0 0.0
  %1523 = vmatpush2.msra.mxu0 0.0
  %1524 = vmatprep.subr.mxu0 0.0
  %1525 = vmatpush2.msra.mxu0 0.0
  %1526 = vmatprep.subr.mxu0 0.0
  %1527 = vmatpush2.msra.mxu0 0.0
  %1528 = vmatprep.subr.mxu0 0.0
  %1529 = vmatpush2.msra.mxu0 0.0
  %1530 = vmatprep.subr.mxu0 0.0
  %1531 = vmatpush2.msra.mxu0 0.0
  %1532 = vmatprep.subr.mxu0 0.0
  %1533 = vmatpush2.msra.mxu0 0.0
  %1534 = vmatprep.subr.mxu0 0.0
  %1535 = vmatpush2.msra.mxu0 0.0
  %1536 = vmatprep.subr.mxu0 0.0
  %1537 = vmatpush2.msra.mxu0 0.0
  %1538 = vmatprep.mubr.f32.mxu0 0.0
  %1539 = vmatmul.mubr.f32.gmra.mxu0 %v1470
  %v1540 = vpop.f32.mrf.mxu0
  %v1541 = vadd.f32 0.0, %v1540
  %v1542 = vpop.f32.mrf.mxu0
  %1543 = vmatprep.mubr.f32.mxu0 0.0
  %1544 = vmatmul.mubr.f32.gmra.mxu0 %v1471
  %v1545 = vpop.f32.mrf.mxu0
  %v1546 = vadd.f32 0.0, %v1545
  %v1547 = vpop.f32.mrf.mxu0
  %1548 = vmatprep.mubr.f32.mxu0 0.0
  %1549 = vmatmul.mubr.f32.gmra.mxu0 %v1472
  %v1550 = vpop.f32.mrf.mxu0
  %v1551 = vadd.f32 0.0, %v1550
  %v1552 = vpop.f32.mrf.mxu0
  %1553 = vmatprep.mubr.f32.mxu0 0.0
  %1554 = vmatmul.mubr.f32.gmra.mxu0 %v1473
  %v1555 = vpop.f32.mrf.mxu0
  %v1556 = vadd.f32 0.0, %v1555
  %v1557 = vpop.f32.mrf.mxu0
  %1558 = vdwg.mxu0
  %v1559 = vadd.f32 %v1541, %v1546
  %v1560 = vadd.f32 %v1559, %v1551
  %v1561 = vadd.f32 %v1560, %v1556
  %v1562 = vrot.slane %v1561, 4
  %v1563 = vadd.f32 %v1561, %v1562
  %v1564 = vrot.slane %v1563, 2
  %v1565 = vadd.f32 %v1563, %v1564
  %v1566 = vrot.slane %v1565, 1
  %v1567 = vadd.f32 %v1565, %v1566
  %v1568 = vmul.f32 %v1470, %v1423
  %v1569 = vmul.f32 %v1471, %v1428
  %v1570 = vmul.f32 %v1472, %v1433
  %v1571 = vmul.f32 %v1473, %v1438
  %1572 = vmatprep.subr.mxu0 0.0
  %1573 = vmatpush1.msra.mxu0 %v822
  %1574 = vmatprep.subr.mxu0 0.0
  %1575 = vmatpush1.msra.mxu0 %v821
  %1576 = vmatprep.subr.mxu0 0.0
  %1577 = vmatpush1.msra.mxu0 %v820
  %1578 = vmatprep.subr.mxu0 0.0
  %1579 = vmatpush1.msra.mxu0 %v819
  %1580 = vmatprep.subr.mxu0 0.0
  %1581 = vmatpush1.msra.mxu0 %v818
  %1582 = vmatprep.subr.mxu0 0.0
  %1583 = vmatpush1.msra.mxu0 %v817
  %1584 = vmatprep.subr.mxu0 0.0
  %1585 = vmatpush1.msra.mxu0 %v816
  %1586 = vmatprep.subr.mxu0 0.0
  %1587 = vmatpush1.msra.mxu0 %v815
  %1588 = vmatprep.subr.mxu0 0.0
  %1589 = vmatpush1.msra.mxu0 %v814
  %1590 = vmatprep.subr.mxu0 0.0
  %1591 = vmatpush1.msra.mxu0 %v813
  %1592 = vmatprep.subr.mxu0 0.0
  %1593 = vmatpush1.msra.mxu0 %v812
  %1594 = vmatprep.subr.mxu0 0.0
  %1595 = vmatpush1.msra.mxu0 %v811
  %1596 = vmatprep.subr.mxu0 0.0
  %1597 = vmatpush1.msra.mxu0 %v810
  %1598 = vmatprep.subr.mxu0 0.0
  %1599 = vmatpush1.msra.mxu0 %v809
  %1600 = vmatprep.subr.mxu0 0.0
  %1601 = vmatpush1.msra.mxu0 %v808
  %1602 = vmatprep.subr.mxu0 0.0
  %1603 = vmatpush1.msra.mxu0 %v807
  %1604 = vmatprep.subr.mxu0 0.0
  %1605 = vmatpush2.msra.mxu0 0.0
  %1606 = vmatprep.subr.mxu0 0.0
  %1607 = vmatpush2.msra.mxu0 0.0
  %1608 = vmatprep.subr.mxu0 0.0
  %1609 = vmatpush2.msra.mxu0 0.0
  %1610 = vmatprep.subr.mxu0 0.0
  %1611 = vmatpush2.msra.mxu0 0.0
  %1612 = vmatprep.subr.mxu0 0.0
  %1613 = vmatpush2.msra.mxu0 0.0
  %1614 = vmatprep.subr.mxu0 0.0
  %1615 = vmatpush2.msra.mxu0 0.0
  %1616 = vmatprep.subr.mxu0 0.0
  %1617 = vmatpush2.msra.mxu0 0.0
  %1618 = vmatprep.subr.mxu0 0.0
  %1619 = vmatpush2.msra.mxu0 0.0
  %1620 = vmatprep.subr.mxu0 0.0
  %1621 = vmatpush2.msra.mxu0 0.0
  %1622 = vmatprep.subr.mxu0 0.0
  %1623 = vmatpush2.msra.mxu0 0.0
  %1624 = vmatprep.subr.mxu0 0.0
  %1625 = vmatpush2.msra.mxu0 0.0
  %1626 = vmatprep.subr.mxu0 0.0
  %1627 = vmatpush2.msra.mxu0 0.0
  %1628 = vmatprep.subr.mxu0 0.0
  %1629 = vmatpush2.msra.mxu0 0.0
  %1630 = vmatprep.subr.mxu0 0.0
  %1631 = vmatpush2.msra.mxu0 0.0
  %1632 = vmatprep.subr.mxu0 0.0
  %1633 = vmatpush2.msra.mxu0 0.0
  %1634 = vmatprep.subr.mxu0 0.0
  %1635 = vmatpush2.msra.mxu0 0.0
  %1636 = vmatprep.mubr.f32.mxu0 0.0
  %1637 = vmatmul.mubr.f32.gmra.mxu0 %v1568
  %v1638 = vpop.f32.mrf.mxu0
  %v1639 = vadd.f32 0.0, %v1638
  %v1640 = vpop.f32.mrf.mxu0
  %1641 = vmatprep.mubr.f32.mxu0 0.0
  %1642 = vmatmul.mubr.f32.gmra.mxu0 %v1569
  %v1643 = vpop.f32.mrf.mxu0
  %v1644 = vadd.f32 0.0, %v1643
  %v1645 = vpop.f32.mrf.mxu0
  %1646 = vmatprep.mubr.f32.mxu0 0.0
  %1647 = vmatmul.mubr.f32.gmra.mxu0 %v1570
  %v1648 = vpop.f32.mrf.mxu0
  %v1649 = vadd.f32 0.0, %v1648
  %v1650 = vpop.f32.mrf.mxu0
  %1651 = vmatprep.mubr.f32.mxu0 0.0
  %1652 = vmatmul.mubr.f32.gmra.mxu0 %v1571
  %v1653 = vpop.f32.mrf.mxu0
  %v1654 = vadd.f32 0.0, %v1653
  %v1655 = vpop.f32.mrf.mxu0
  %1656 = vdwg.mxu0
  %v1657 = vadd.f32 %v1639, %v1644
  %v1658 = vadd.f32 %v1657, %v1649
  %v1659 = vadd.f32 %v1658, %v1654
  %v1660 = vrot.slane %v1659, 4
  %v1661 = vadd.f32 %v1659, %v1660
  %v1662 = vrot.slane %v1661, 2
  %v1663 = vadd.f32 %v1661, %v1662
  %v1664 = vrot.slane %v1663, 1
  %v1665 = vadd.f32 %v1663, %v1664
  %v1666 = vmul.f32 %v1567, 0.0034722222
  %v1667 = vmul.f32 %v1665, 0.0034722222
  %v1668 = vmul.f32 %v1666, %v1666
  %v1669 = vsub.f32 %v1667, %v1668
  %v1670 = vmax.f32 %v1669, 0.0
  %v1671 = vadd.f32 %v1670, 1e-05
  %v1672 = vrsqrt.pop %v1671
  %v1673 = vmul.f32 %v1441, %v1672
  %v1674 = vmul.f32 %v1666, %v1673
  %v1675 = vsub.f32 %v1442, %v1674
  %v1677 = vlaneseq
  %v1678 = vshrl.u32 %v1677, 7
  %v1679 = vsub.s32 0, %v1678
  %v1680 = vrot.slane %v1673, %v1679
  %v1682 = vmul.f32 %v1423, %v1680
  %v1683 = vmul.f32 %v1428, %v1680
  %v1684 = vmul.f32 %v1433, %v1680
  %v1685 = vmul.f32 %v1438, %v1680
  %v1687 = vlaneseq
  %v1688 = vshrl.u32 %v1687, 7
  %v1689 = vsub.s32 0, %v1688
  %v1690 = vrot.slane %v1675, %v1689
  %v1692 = vadd.f32 %v1682, %v1690
  %v1693 = vadd.f32 %v1683, %v1690
  %v1694 = vadd.f32 %v1684, %v1690
  %v1695 = vadd.f32 %v1685, %v1690
  %v1696 = vmax.f32 %v1692, 0.0
  %v1697 = vmax.f32 %v1693, 0.0
  %v1698 = vmax.f32 %v1694, 0.0
  %v1699 = vmax.f32 %v1695, 0.0
  %1700 = vst [vmem:[%s7] sm:$0xff] %v1696
  %1701 = vst [vmem:[%s7 + $0x8] sm:$0xff] %v1697
  %1702 = vst [vmem:[%s7 + $0x10] sm:$0xff] %v1698
  %1703 = vst [vmem:[%s7 + $0x18] sm:$0xff] %v1699
  // Predicated region
  $region30: #{plain_cnn_forward.1} parent=0 // pred_check
    _
  $region31: #{plain_cnn_forward.1} parent=0 // pred_check_branch
    %1705 = sbr.rel (0) target = $region33
  $region32: #{plain_cnn_forward.1} parent=0 // pred_region
    _
  $region33: #{plain_cnn_forward.1} parent=0 // pred_fallthru
    _
  // Predicated region
  $region34: #{plain_cnn_forward.1} parent=0 // pred_check
    _
  $region35: #{plain_cnn_forward.1} parent=0 // pred_check_branch
    %1707 = sbr.rel (0) target = $region37
  $region36: #{plain_cnn_forward.1} parent=0 // pred_region
    _
  $region37: #{plain_cnn_forward.1} parent=0 // pred_fallthru
    _

</llo_original>
